<compile_context>
chip_gen: v7x
topology: tpu7x:2x2x1
jax: 0.10.0
libtpu: 0.0.40
codegen_flags: <defaults>
</compile_context>

<pallas_src>
import jax
import jax.numpy as jnp
from jax.experimental import pallas as pl
from jax.experimental.pallas import tpu as pltpu

K = 3     # conv taps
PAD = 1   # 'same' padding for K=3


# ----------------------------------------------------------------------------
# Fused Pallas kernel
# ----------------------------------------------------------------------------
def _fused_resnet1d_kernel(x_ref, w0_ref, s0_ref, t0_ref,
                           w1_ref, s1_ref, t1_ref,
                           w2_ref, s2_ref, t2_ref,
                           wh_ref, bh_ref,
                           gen_ref, act_ref,
                           x0_scr, h1_scr, h2_scr, f_scr):
    """Whole ResNet_1d forward for the full batch in one kernel invocation.

    x_ref  : (B, Cin, L)  PyTorch NCW input (channels-first, used as-is)
    w*_ref : (Cout, K*Cin)   im2col conv weights
    s*/t*  : (Cout, 1)       folded BN (+conv bias) affine
    wh_ref : (11, Cout, L)   dense1+dense2 weights, PyTorch flatten folded in
    bh_ref : (1, 11)         dense1+dense2 biases
    gen_ref: (B, 1), act_ref: (B, 10)
    scratch: padded-activation buffers, channels-first, batch folded on lanes
    """
    B, Cin, L = x_ref.shape
    Lp = L + 2 * PAD              # per-batch padded length
    BLp = B * Lp                  # batch folded onto the lane axis
    W = BLp - (K - 1)             # width for which all K taps stay in-bounds
    n_act = act_ref.shape[1]      # 10 actions

    # ---- padded input: X0[c, b*Lp + 1 + l] = x[b, c, l]; halo columns zero
    x0_scr[...] = jnp.zeros_like(x0_scr)
    for b in range(B):
        x0_scr[:, pl.ds(b * Lp + PAD, L)] = x_ref[b]

    # ---- validity mask for re-padding between layers (kills the two garbage
    #      columns at each batch boundary); hoisted, reused by both repads
    col = jax.lax.broadcasted_iota(jnp.int32, (1, W), 1)
    bad = col < 0                                  # all-False
    for b in range(B):
        bad = bad | ((col >= b * Lp + L) & (col <= b * Lp + L + 1))
    keep = jnp.logical_not(bad)

    def conv_bn(src_ref, w_ref, s_ref, t_ref):
        # im2col over the K taps -> a single MXU matmul per layer
        taps = [src_ref[:, pl.ds(k, W)] for k in range(K)]
        xcat = jnp.concatenate(taps, axis=0)                     # (K*Cin, W)
        y = jnp.dot(w_ref[...], xcat,
                    preferred_element_type=jnp.float32)          # (Cout, W)
        return y * s_ref[...] + t_ref[...]                       # folded BN

    def repad(dst_ref, a):
        # next layer's padded input: shift right by one column, zero halos
        dst_ref[...] = jnp.zeros_like(dst_ref)
        dst_ref[:, pl.ds(PAD, W)] = jnp.where(keep, a, 0.0)

    # ---- stem: conv + BN + ReLU
    a1 = jnp.maximum(conv_bn(x0_scr, w0_ref, s0_ref, t0_ref), 0.0)   # (C, W)
    repad(h1_scr, a1)
    # ---- BasicBlock conv1: conv + BN + ReLU
    a2 = jnp.maximum(conv_bn(h1_scr, w1_ref, s1_ref, t1_ref), 0.0)
    repad(h2_scr, a2)
    # ---- BasicBlock conv2: conv + BN + residual(stem out) + ReLU
    a3 = jnp.maximum(conv_bn(h2_scr, w2_ref, s2_ref, t2_ref) + a1, 0.0)
    f_scr[...] = a3                                                  # (C, W)

    # ---- fused dense1/dense2 heads + LogSoftmax
    #      out[b, n] = sum_{c,l} feat[b, c, l] * wh[n, c, l] + bias[n]
    #      (== PyTorch  flatten(B, C*L) @ W_dense  with channel-major flatten)
    def log_softmax(z):                                   # z: (1, n)
        m = jnp.max(z, axis=1, keepdims=True)
        y = z - m
        return y - jnp.log(jnp.sum(jnp.exp(y), axis=1, keepdims=True))

    def contract(fb, wn):                                 # -> (1, 1)
        p = jnp.sum(fb * wn, axis=1, keepdims=True)       # lane reduce (C, 1)
        return jnp.sum(p, axis=0, keepdims=True)          # sublane reduce

    for b in range(B):
        fb = f_scr[:, pl.ds(b * Lp, L)]                   # (Cout, L) features
        zg = contract(fb, wh_ref[0]) + bh_ref[:, pl.ds(0, 1)]          # (1, 1)
        za = jnp.concatenate(
            [contract(fb, wh_ref[1 + n]) for n in range(n_act)], axis=1
        ) + bh_ref[:, pl.ds(1, n_act)]                                 # (1, 10)
        gen_ref[pl.ds(b, 1), :] = log_softmax(zg).astype(gen_ref.dtype)
        act_ref[pl.ds(b, 1), :] = log_softmax(za).astype(act_ref.dtype)


# ----------------------------------------------------------------------------
# Wrapper: one pallas_call, whole-array VMEM blocks, no grid
# ----------------------------------------------------------------------------
def resnet_1d_forward(x_ncw, params):
    """Fused ResNet_1d forward.  x_ncw: (B, Cin, L) in PyTorch NCW layout."""
    B, Cin, L = x_ncw.shape
    Cout = params["w_stem"].shape[0]
    n_heads = params["w_heads"].shape[0]          # 1 genus + 10 actions
    Lp = L + 2 * PAD
    BLp = B * Lp
    W = BLp - (K - 1)

    return pl.pallas_call(
        _fused_resnet1d_kernel,
        out_shape=(
            jax.ShapeDtypeStruct((B, 1), jnp.float32),
            jax.ShapeDtypeStruct((B, n_heads - 1), jnp.float32),
        ),
        scratch_shapes=[
            pltpu.VMEM((Cin, BLp), jnp.float32),    # padded input
            pltpu.VMEM((Cout, BLp), jnp.float32),   # padded stem output
            pltpu.VMEM((Cout, BLp), jnp.float32),   # padded block-conv1 output
            pltpu.VMEM((Cout, W), jnp.float32),     # final features for heads
        ],
    )(x_ncw,
      params["w_stem"], params["s_stem"], params["t_stem"],
      params["w_b1"], params["s_b1"], params["t_b1"],
      params["w_b2"], params["s_b2"], params["t_b2"],
      params["w_heads"], params["b_heads"])


# ----------------------------------------------------------------------------
# Deterministic parameters, pre-converted OFFLINE to kernel-ready layouts
# ----------------------------------------------------------------------------
def make_params(key, cin, cout, length):
    ks = jax.random.split(key, 12)
    eps = 1e-5

    def conv_params(kw, kb, kg, kbeta, ci, co):
        w = jax.random.normal(kw, (K, ci, co), jnp.float32) / jnp.sqrt(ci * K)
        bias = jax.random.normal(kb, (co,), jnp.float32) * 0.1
        gamma = 1.0 + 0.1 * jax.random.normal(kg, (co,), jnp.float32)
        beta = 0.1 * jax.random.normal(kbeta, (co,), jnp.float32)
        # eval-mode BN (running_mean=0, running_var=1) folded with conv bias
        scale = gamma / jnp.sqrt(1.0 + eps)
        shift = bias * scale + beta
        # kernel layout: (Cout, K*Cin), column index k*Cin + ci
        w_cat = w.reshape(K * ci, co).T
        return w_cat, scale.reshape(co, 1), shift.reshape(co, 1)

    w_stem, s_stem, t_stem = conv_params(ks[0], ks[1], ks[2], ks[3], cin, cout)
    w_b1, s_b1, t_b1 = conv_params(ks[4], ks[5], ks[6], ks[7], cout, cout)
    w_b2, s_b2, t_b2 = conv_params(ks[8], ks[9], ks[10], ks[11], cout, cout)

    feat_dim = cout * length                      # 3200 = dense in_features
    kh = jax.random.split(jax.random.fold_in(key, 99), 4)
    w_dense1 = jax.random.normal(kh[0], (feat_dim, 1), jnp.float32) / jnp.sqrt(feat_dim)
    b_dense1 = jax.random.normal(kh[1], (1,), jnp.float32) * 0.1
    w_dense2 = jax.random.normal(kh[2], (feat_dim, 10), jnp.float32) / jnp.sqrt(feat_dim)
    b_dense2 = jax.random.normal(kh[3], (10,), jnp.float32) * 0.1

    # Fuse dense1+dense2 and fold PyTorch's channel-major (C*L) flatten into
    # the weight layout offline:  w_heads[n, c, l] == W_dense[c*L + l, n].
    w_heads = jnp.concatenate([w_dense1, w_dense2], axis=1).T.reshape(
        1 + 10, cout, length)
    b_heads = jnp.concatenate([b_dense1, b_dense2]).reshape(1, 11)

    return dict(
        w_stem=w_stem, s_stem=s_stem, t_stem=t_stem,
        w_b1=w_b1, s_b1=s_b1, t_b1=t_b1,
        w_b2=w_b2, s_b2=s_b2, t_b2=t_b2,
        w_heads=w_heads, b_heads=b_heads,
    )


# ----------------------------------------------------------------------------
# Pure-JAX reference (identical math) for correctness checking
# ----------------------------------------------------------------------------
def resnet_1d_reference(x, params):
    hi = jax.lax.Precision.HIGHEST

    def conv_bn(h, w_cat, s, t):                  # h: (B, C, L)
        b, c, l = h.shape
        hp = jnp.pad(h, ((0, 0), (0, 0), (PAD, PAD)))
        cols = jnp.stack([hp[:, :, k:k + l] for k in range(K)], axis=1)
        cols = cols.reshape(b, K * c, l)
        y = jnp.einsum("oc,bcl->bol", w_cat, cols, precision=hi)
        return y * s[None] + t[None]

    a1 = jnp.maximum(conv_bn(x, params["w_stem"], params["s_stem"], params["t_stem"]), 0.0)
    a2 = jnp.maximum(conv_bn(a1, params["w_b1"], params["s_b1"], params["t_b1"]), 0.0)
    a3 = jnp.maximum(conv_bn(a2, params["w_b2"], params["s_b2"], params["t_b2"]) + a1, 0.0)

    feat = a3.reshape(a3.shape[0], -1)            # PyTorch channel-major flatten
    wh = params["w_heads"].reshape(params["w_heads"].shape[0], -1)
    z = jnp.dot(feat, wh.T, precision=hi) + params["b_heads"][0]
    log_softmax = lambda v: v - jax.nn.logsumexp(v, axis=1, keepdims=True)
    return log_softmax(z[:, :1]), log_softmax(z[:, 1:])


# ----------------------------------------------------------------------------
if __name__ == "__main__":
    B, Cin, L, Cout = 2, 4, 100, 32          # Cout * L = 3200 = dense in_features
    key = jax.random.PRNGKey(0)
    k_x, k_p = jax.random.split(key)

    x = jax.random.normal(k_x, (B, Cin, L), jnp.float32)   # PyTorch NCW input
    params = make_params(k_p, Cin, Cout, L)

    out_gen, out_act = resnet_1d_forward(x, params)
    jax.block_until_ready((out_gen, out_act))

    assert out_gen.shape == (B, 1) and out_act.shape == (B, 10)
    # log-softmax rows must exponentiate-sum to 1
    assert jnp.allclose(jnp.sum(jnp.exp(out_act), axis=1), 1.0, atol=1e-4)
    assert jnp.allclose(jnp.sum(jnp.exp(out_gen), axis=1), 1.0, atol=1e-4)
    # cross-check against the pure-JAX reference of the same forward pass
    ref_gen, ref_act = resnet_1d_reference(x, params)
    assert jnp.allclose(out_gen, ref_gen, atol=5e-2, rtol=5e-2)
    assert jnp.allclose(out_act, ref_act, atol=5e-2, rtol=5e-2)
    print("KERNEL_OK")
</pallas_src>

<mosaic_0001>
module attributes {stable_mosaic.version = 11 : i64} {
  func.func @_fused_resnet1d_kernel(%arg0: memref<2x4x100xf32, #tpu.memory_space<vmem>>, %arg1: memref<32x12xf32, #tpu.memory_space<vmem>>, %arg2: memref<32x1xf32, #tpu.memory_space<vmem>>, %arg3: memref<32x1xf32, #tpu.memory_space<vmem>>, %arg4: memref<32x96xf32, #tpu.memory_space<vmem>>, %arg5: memref<32x1xf32, #tpu.memory_space<vmem>>, %arg6: memref<32x1xf32, #tpu.memory_space<vmem>>, %arg7: memref<32x96xf32, #tpu.memory_space<vmem>>, %arg8: memref<32x1xf32, #tpu.memory_space<vmem>>, %arg9: memref<32x1xf32, #tpu.memory_space<vmem>>, %arg10: memref<11x32x100xf32, #tpu.memory_space<vmem>>, %arg11: memref<1x11xf32, #tpu.memory_space<vmem>>, %arg12: memref<2x1xf32, #tpu.memory_space<vmem>>, %arg13: memref<2x10xf32, #tpu.memory_space<vmem>>, %arg14: memref<4x204xf32, #tpu.memory_space<vmem>>, %arg15: memref<32x204xf32, #tpu.memory_space<vmem>>, %arg16: memref<32x204xf32, #tpu.memory_space<vmem>>, %arg17: memref<32x202xf32, #tpu.memory_space<vmem>>) attributes {dimension_semantics = [], scalar_prefetch = 0 : i64, scratch_operands = 4 : i64, tpu.core_type = #tpu.core_type<tc>} {
    %cst = arith.constant 0.000000e+00 : f32
    %0 = vector.broadcast %cst : f32 to vector<4x204xf32>
    %c0 = arith.constant 0 : index
    %c0_0 = arith.constant 0 : index
    %1 = vector.load %arg14[%c0, %c0_0] : memref<4x204xf32, #tpu.memory_space<vmem>>, vector<4x204xf32>
    tpu.vector_store %arg14[%c0, %c0_0], %0 {strides = array<i32>} : memref<4x204xf32, #tpu.memory_space<vmem>>, vector<4x204xf32>,
    %c0_1 = arith.constant 0 : index
    %c0_2 = arith.constant 0 : index
    %c0_3 = arith.constant 0 : index
    %2 = vector.load %arg0[%c0_1, %c0_2, %c0_3] : memref<2x4x100xf32, #tpu.memory_space<vmem>>, vector<1x4x100xf32>
    %3 = vector.shape_cast %2 : vector<1x4x100xf32> to vector<4x100xf32>
    %c0_4 = arith.constant 0 : index
    %c1 = arith.constant 1 : index
    %4 = vector.load %arg14[%c0_4, %c1] : memref<4x204xf32, #tpu.memory_space<vmem>>, vector<4x100xf32>
    tpu.vector_store %arg14[%c0_4, %c1], %3 {strides = array<i32>} : memref<4x204xf32, #tpu.memory_space<vmem>>, vector<4x100xf32>,
    %c1_5 = arith.constant 1 : index
    %c0_6 = arith.constant 0 : index
    %c0_7 = arith.constant 0 : index
    %5 = vector.load %arg0[%c1_5, %c0_6, %c0_7] : memref<2x4x100xf32, #tpu.memory_space<vmem>>, vector<1x4x100xf32>
    %6 = vector.shape_cast %5 : vector<1x4x100xf32> to vector<4x100xf32>
    %c0_8 = arith.constant 0 : index
    %c103 = arith.constant 103 : index
    %7 = vector.load %arg14[%c0_8, %c103] : memref<4x204xf32, #tpu.memory_space<vmem>>, vector<4x100xf32>
    tpu.vector_store %arg14[%c0_8, %c103], %6 {strides = array<i32>} : memref<4x204xf32, #tpu.memory_space<vmem>>, vector<4x100xf32>,
    %8 = tpu.iota {dimensions = array<i32: 1>} : vector<1x202xi32>
    %c0_i32 = arith.constant 0 : i32
    %9 = vector.broadcast %c0_i32 : i32 to vector<1x202xi32>
    %10 = arith.cmpi slt, %8, %9 : vector<1x202xi32>
    %c100_i32 = arith.constant 100 : i32
    %11 = vector.broadcast %c100_i32 : i32 to vector<1x202xi32>
    %12 = arith.cmpi sge, %8, %11 : vector<1x202xi32>
    %c101_i32 = arith.constant 101 : i32
    %13 = vector.broadcast %c101_i32 : i32 to vector<1x202xi32>
    %14 = arith.cmpi sle, %8, %13 : vector<1x202xi32>
    %15 = arith.andi %12, %14 : vector<1x202xi1>
    %16 = arith.ori %10, %15 : vector<1x202xi1>
    %c202_i32 = arith.constant 202 : i32
    %17 = vector.broadcast %c202_i32 : i32 to vector<1x202xi32>
    %18 = arith.cmpi sge, %8, %17 : vector<1x202xi32>
    %c203_i32 = arith.constant 203 : i32
    %19 = vector.broadcast %c203_i32 : i32 to vector<1x202xi32>
    %20 = arith.cmpi sle, %8, %19 : vector<1x202xi32>
    %21 = arith.andi %18, %20 : vector<1x202xi1>
    %22 = arith.ori %16, %21 : vector<1x202xi1>
    %cst_9 = arith.constant dense<true> : vector<1x202xi1>
    %23 = arith.xori %22, %cst_9 : vector<1x202xi1>
    %c0_10 = arith.constant 0 : index
    %c0_11 = arith.constant 0 : index
    %24 = vector.load %arg14[%c0_10, %c0_11] : memref<4x204xf32, #tpu.memory_space<vmem>>, vector<4x202xf32>
    %c0_12 = arith.constant 0 : index
    %c1_13 = arith.constant 1 : index
    %25 = vector.load %arg14[%c0_12, %c1_13] : memref<4x204xf32, #tpu.memory_space<vmem>>, vector<4x202xf32>
    %c0_14 = arith.constant 0 : index
    %c2 = arith.constant 2 : index
    %26 = vector.load %arg14[%c0_14, %c2] : memref<4x204xf32, #tpu.memory_space<vmem>>, vector<4x202xf32>
    %27 = tpu.concatenate %24, %25, %26 in 0 : vector<4x202xf32>, vector<4x202xf32>, vector<4x202xf32> -> vector<12x202xf32>
    %c0_15 = arith.constant 0 : index
    %c0_16 = arith.constant 0 : index
    %28 = vector.load %arg1[%c0_15, %c0_16] : memref<32x12xf32, #tpu.memory_space<vmem>>, vector<32x12xf32>
    %cst_17 = arith.constant dense<0.000000e+00> : vector<32x202xf32>
    %29 = tpu.matmul %28, %27, %cst_17 {dimension_numbers = #tpu.dot_dimension_numbers<[1], [0], [0], [1], [0, 0, 1, 1], [], []>} : vector<32x12xf32>, vector<12x202xf32>, vector<32x202xf32> -> vector<32x202xf32>
    %c0_18 = arith.constant 0 : index
    %c0_19 = arith.constant 0 : index
    %30 = vector.load %arg2[%c0_18, %c0_19] : memref<32x1xf32, #tpu.memory_space<vmem>>, vector<32x1xf32>
    %31 = vector.broadcast %30 : vector<32x1xf32> to vector<32x202xf32>
    %32 = arith.mulf %29, %31 : vector<32x202xf32>
    %c0_20 = arith.constant 0 : index
    %c0_21 = arith.constant 0 : index
    %33 = vector.load %arg3[%c0_20, %c0_21] : memref<32x1xf32, #tpu.memory_space<vmem>>, vector<32x1xf32>
    %34 = vector.broadcast %33 : vector<32x1xf32> to vector<32x202xf32>
    %35 = arith.addf %32, %34 : vector<32x202xf32>
    %cst_22 = arith.constant 0.000000e+00 : f32
    %36 = vector.broadcast %cst_22 : f32 to vector<32x202xf32>
    %37 = arith.maximumf %35, %36 : vector<32x202xf32>
    %cst_23 = arith.constant 0.000000e+00 : f32
    %38 = vector.broadcast %cst_23 : f32 to vector<32x204xf32>
    %c0_24 = arith.constant 0 : index
    %c0_25 = arith.constant 0 : index
    %39 = vector.load %arg15[%c0_24, %c0_25] : memref<32x204xf32, #tpu.memory_space<vmem>>, vector<32x204xf32>
    tpu.vector_store %arg15[%c0_24, %c0_25], %38 {strides = array<i32>} : memref<32x204xf32, #tpu.memory_space<vmem>>, vector<32x204xf32>,
    %cst_26 = arith.constant 0.000000e+00 : f32
    %40 = vector.shape_cast %23 : vector<1x202xi1> to vector<1x202xi1>
    %41 = vector.broadcast %40 : vector<1x202xi1> to vector<32x202xi1>
    %42 = vector.broadcast %cst_26 : f32 to vector<32x202xf32>
    %43 = arith.select %41, %37, %42 : vector<32x202xi1>, vector<32x202xf32>
    %c0_27 = arith.constant 0 : index
    %c1_28 = arith.constant 1 : index
    %44 = vector.load %arg15[%c0_27, %c1_28] : memref<32x204xf32, #tpu.memory_space<vmem>>, vector<32x202xf32>
    tpu.vector_store %arg15[%c0_27, %c1_28], %43 {strides = array<i32>} : memref<32x204xf32, #tpu.memory_space<vmem>>, vector<32x202xf32>,
    %c0_29 = arith.constant 0 : index
    %c0_30 = arith.constant 0 : index
    %45 = vector.load %arg15[%c0_29, %c0_30] : memref<32x204xf32, #tpu.memory_space<vmem>>, vector<32x202xf32>
    %c0_31 = arith.constant 0 : index
    %c1_32 = arith.constant 1 : index
    %46 = vector.load %arg15[%c0_31, %c1_32] : memref<32x204xf32, #tpu.memory_space<vmem>>, vector<32x202xf32>
    %c0_33 = arith.constant 0 : index
    %c2_34 = arith.constant 2 : index
    %47 = vector.load %arg15[%c0_33, %c2_34] : memref<32x204xf32, #tpu.memory_space<vmem>>, vector<32x202xf32>
    %48 = tpu.concatenate %45, %46, %47 in 0 : vector<32x202xf32>, vector<32x202xf32>, vector<32x202xf32> -> vector<96x202xf32>
    %c0_35 = arith.constant 0 : index
    %c0_36 = arith.constant 0 : index
    %49 = vector.load %arg4[%c0_35, %c0_36] : memref<32x96xf32, #tpu.memory_space<vmem>>, vector<32x96xf32>
    %cst_37 = arith.constant dense<0.000000e+00> : vector<32x202xf32>
    %50 = tpu.matmul %49, %48, %cst_37 {dimension_numbers = #tpu.dot_dimension_numbers<[1], [0], [0], [1], [0, 0, 1, 1], [], []>} : vector<32x96xf32>, vector<96x202xf32>, vector<32x202xf32> -> vector<32x202xf32>
    %c0_38 = arith.constant 0 : index
    %c0_39 = arith.constant 0 : index
    %51 = vector.load %arg5[%c0_38, %c0_39] : memref<32x1xf32, #tpu.memory_space<vmem>>, vector<32x1xf32>
    %52 = vector.broadcast %51 : vector<32x1xf32> to vector<32x202xf32>
    %53 = arith.mulf %50, %52 : vector<32x202xf32>
    %c0_40 = arith.constant 0 : index
    %c0_41 = arith.constant 0 : index
    %54 = vector.load %arg6[%c0_40, %c0_41] : memref<32x1xf32, #tpu.memory_space<vmem>>, vector<32x1xf32>
    %55 = vector.broadcast %54 : vector<32x1xf32> to vector<32x202xf32>
    %56 = arith.addf %53, %55 : vector<32x202xf32>
    %cst_42 = arith.constant 0.000000e+00 : f32
    %57 = vector.broadcast %cst_42 : f32 to vector<32x202xf32>
    %58 = arith.maximumf %56, %57 : vector<32x202xf32>
    %cst_43 = arith.constant 0.000000e+00 : f32
    %59 = vector.broadcast %cst_43 : f32 to vector<32x204xf32>
    %c0_44 = arith.constant 0 : index
    %c0_45 = arith.constant 0 : index
    %60 = vector.load %arg16[%c0_44, %c0_45] : memref<32x204xf32, #tpu.memory_space<vmem>>, vector<32x204xf32>
    tpu.vector_store %arg16[%c0_44, %c0_45], %59 {strides = array<i32>} : memref<32x204xf32, #tpu.memory_space<vmem>>, vector<32x204xf32>,
    %cst_46 = arith.constant 0.000000e+00 : f32
    %61 = vector.shape_cast %23 : vector<1x202xi1> to vector<1x202xi1>
    %62 = vector.broadcast %61 : vector<1x202xi1> to vector<32x202xi1>
    %63 = vector.broadcast %cst_46 : f32 to vector<32x202xf32>
    %64 = arith.select %62, %58, %63 : vector<32x202xi1>, vector<32x202xf32>
    %c0_47 = arith.constant 0 : index
    %c1_48 = arith.constant 1 : index
    %65 = vector.load %arg16[%c0_47, %c1_48] : memref<32x204xf32, #tpu.memory_space<vmem>>, vector<32x202xf32>
    tpu.vector_store %arg16[%c0_47, %c1_48], %64 {strides = array<i32>} : memref<32x204xf32, #tpu.memory_space<vmem>>, vector<32x202xf32>,
    %c0_49 = arith.constant 0 : index
    %c0_50 = arith.constant 0 : index
    %66 = vector.load %arg16[%c0_49, %c0_50] : memref<32x204xf32, #tpu.memory_space<vmem>>, vector<32x202xf32>
    %c0_51 = arith.constant 0 : index
    %c1_52 = arith.constant 1 : index
    %67 = vector.load %arg16[%c0_51, %c1_52] : memref<32x204xf32, #tpu.memory_space<vmem>>, vector<32x202xf32>
    %c0_53 = arith.constant 0 : index
    %c2_54 = arith.constant 2 : index
    %68 = vector.load %arg16[%c0_53, %c2_54] : memref<32x204xf32, #tpu.memory_space<vmem>>, vector<32x202xf32>
    %69 = tpu.concatenate %66, %67, %68 in 0 : vector<32x202xf32>, vector<32x202xf32>, vector<32x202xf32> -> vector<96x202xf32>
    %c0_55 = arith.constant 0 : index
    %c0_56 = arith.constant 0 : index
    %70 = vector.load %arg7[%c0_55, %c0_56] : memref<32x96xf32, #tpu.memory_space<vmem>>, vector<32x96xf32>
    %cst_57 = arith.constant dense<0.000000e+00> : vector<32x202xf32>
    %71 = tpu.matmul %70, %69, %cst_57 {dimension_numbers = #tpu.dot_dimension_numbers<[1], [0], [0], [1], [0, 0, 1, 1], [], []>} : vector<32x96xf32>, vector<96x202xf32>, vector<32x202xf32> -> vector<32x202xf32>
    %c0_58 = arith.constant 0 : index
    %c0_59 = arith.constant 0 : index
    %72 = vector.load %arg8[%c0_58, %c0_59] : memref<32x1xf32, #tpu.memory_space<vmem>>, vector<32x1xf32>
    %73 = vector.broadcast %72 : vector<32x1xf32> to vector<32x202xf32>
    %74 = arith.mulf %71, %73 : vector<32x202xf32>
    %c0_60 = arith.constant 0 : index
    %c0_61 = arith.constant 0 : index
    %75 = vector.load %arg9[%c0_60, %c0_61] : memref<32x1xf32, #tpu.memory_space<vmem>>, vector<32x1xf32>
    %76 = vector.broadcast %75 : vector<32x1xf32> to vector<32x202xf32>
    %77 = arith.addf %74, %76 : vector<32x202xf32>
    %78 = arith.addf %77, %37 : vector<32x202xf32>
    %cst_62 = arith.constant 0.000000e+00 : f32
    %79 = vector.broadcast %cst_62 : f32 to vector<32x202xf32>
    %80 = arith.maximumf %78, %79 : vector<32x202xf32>
    %c0_63 = arith.constant 0 : index
    %c0_64 = arith.constant 0 : index
    %81 = vector.load %arg17[%c0_63, %c0_64] : memref<32x202xf32, #tpu.memory_space<vmem>>, vector<32x202xf32>
    tpu.vector_store %arg17[%c0_63, %c0_64], %80 {strides = array<i32>} : memref<32x202xf32, #tpu.memory_space<vmem>>, vector<32x202xf32>,
    %c0_65 = arith.constant 0 : index
    %c0_66 = arith.constant 0 : index
    %82 = vector.load %arg17[%c0_65, %c0_66] : memref<32x202xf32, #tpu.memory_space<vmem>>, vector<32x100xf32>
    %c0_67 = arith.constant 0 : index
    %c0_68 = arith.constant 0 : index
    %c0_69 = arith.constant 0 : index
    %83 = vector.load %arg10[%c0_67, %c0_68, %c0_69] : memref<11x32x100xf32, #tpu.memory_space<vmem>>, vector<1x32x100xf32>
    %84 = vector.shape_cast %83 : vector<1x32x100xf32> to vector<32x100xf32>
    %85 = arith.mulf %82, %84 : vector<32x100xf32>
    %cst_70 = arith.constant dense<0.000000e+00> : vector<32xf32>
    %86 = vector.multi_reduction <add>, %85, %cst_70 [1] : vector<32x100xf32> to vector<32xf32>
    %87 = vector.shape_cast %86 : vector<32xf32> to vector<32x1xf32>
    %cst_71 = arith.constant dense<0.000000e+00> : vector<1xf32>
    %88 = vector.multi_reduction <add>, %87, %cst_71 [0] : vector<32x1xf32> to vector<1xf32>
    %89 = vector.shape_cast %88 : vector<1xf32> to vector<1x1xf32>
    %c0_72 = arith.constant 0 : index
    %c0_73 = arith.constant 0 : index
    %90 = vector.load %arg11[%c0_72, %c0_73] : memref<1x11xf32, #tpu.memory_space<vmem>>, vector<1x1xf32>
    %91 = arith.addf %89, %90 : vector<1x1xf32>
    %c1_74 = arith.constant 1 : index
    %c0_75 = arith.constant 0 : index
    %c0_76 = arith.constant 0 : index
    %92 = vector.load %arg10[%c1_74, %c0_75, %c0_76] : memref<11x32x100xf32, #tpu.memory_space<vmem>>, vector<1x32x100xf32>
    %93 = vector.shape_cast %92 : vector<1x32x100xf32> to vector<32x100xf32>
    %94 = arith.mulf %82, %93 : vector<32x100xf32>
    %cst_77 = arith.constant dense<0.000000e+00> : vector<32xf32>
    %95 = vector.multi_reduction <add>, %94, %cst_77 [1] : vector<32x100xf32> to vector<32xf32>
    %96 = vector.shape_cast %95 : vector<32xf32> to vector<32x1xf32>
    %cst_78 = arith.constant dense<0.000000e+00> : vector<1xf32>
    %97 = vector.multi_reduction <add>, %96, %cst_78 [0] : vector<32x1xf32> to vector<1xf32>
    %98 = vector.shape_cast %97 : vector<1xf32> to vector<1x1xf32>
    %c2_79 = arith.constant 2 : index
    %c0_80 = arith.constant 0 : index
    %c0_81 = arith.constant 0 : index
    %99 = vector.load %arg10[%c2_79, %c0_80, %c0_81] : memref<11x32x100xf32, #tpu.memory_space<vmem>>, vector<1x32x100xf32>
    %100 = vector.shape_cast %99 : vector<1x32x100xf32> to vector<32x100xf32>
    %101 = arith.mulf %82, %100 : vector<32x100xf32>
    %cst_82 = arith.constant dense<0.000000e+00> : vector<32xf32>
    %102 = vector.multi_reduction <add>, %101, %cst_82 [1] : vector<32x100xf32> to vector<32xf32>
    %103 = vector.shape_cast %102 : vector<32xf32> to vector<32x1xf32>
    %cst_83 = arith.constant dense<0.000000e+00> : vector<1xf32>
    %104 = vector.multi_reduction <add>, %103, %cst_83 [0] : vector<32x1xf32> to vector<1xf32>
    %105 = vector.shape_cast %104 : vector<1xf32> to vector<1x1xf32>
    %c3 = arith.constant 3 : index
    %c0_84 = arith.constant 0 : index
    %c0_85 = arith.constant 0 : index
    %106 = vector.load %arg10[%c3, %c0_84, %c0_85] : memref<11x32x100xf32, #tpu.memory_space<vmem>>, vector<1x32x100xf32>
    %107 = vector.shape_cast %106 : vector<1x32x100xf32> to vector<32x100xf32>
    %108 = arith.mulf %82, %107 : vector<32x100xf32>
    %cst_86 = arith.constant dense<0.000000e+00> : vector<32xf32>
    %109 = vector.multi_reduction <add>, %108, %cst_86 [1] : vector<32x100xf32> to vector<32xf32>
    %110 = vector.shape_cast %109 : vector<32xf32> to vector<32x1xf32>
    %cst_87 = arith.constant dense<0.000000e+00> : vector<1xf32>
    %111 = vector.multi_reduction <add>, %110, %cst_87 [0] : vector<32x1xf32> to vector<1xf32>
    %112 = vector.shape_cast %111 : vector<1xf32> to vector<1x1xf32>
    %c4 = arith.constant 4 : index
    %c0_88 = arith.constant 0 : index
    %c0_89 = arith.constant 0 : index
    %113 = vector.load %arg10[%c4, %c0_88, %c0_89] : memref<11x32x100xf32, #tpu.memory_space<vmem>>, vector<1x32x100xf32>
    %114 = vector.shape_cast %113 : vector<1x32x100xf32> to vector<32x100xf32>
    %115 = arith.mulf %82, %114 : vector<32x100xf32>
    %cst_90 = arith.constant dense<0.000000e+00> : vector<32xf32>
    %116 = vector.multi_reduction <add>, %115, %cst_90 [1] : vector<32x100xf32> to vector<32xf32>
    %117 = vector.shape_cast %116 : vector<32xf32> to vector<32x1xf32>
    %cst_91 = arith.constant dense<0.000000e+00> : vector<1xf32>
    %118 = vector.multi_reduction <add>, %117, %cst_91 [0] : vector<32x1xf32> to vector<1xf32>
    %119 = vector.shape_cast %118 : vector<1xf32> to vector<1x1xf32>
    %c5 = arith.constant 5 : index
    %c0_92 = arith.constant 0 : index
    %c0_93 = arith.constant 0 : index
    %120 = vector.load %arg10[%c5, %c0_92, %c0_93] : memref<11x32x100xf32, #tpu.memory_space<vmem>>, vector<1x32x100xf32>
    %121 = vector.shape_cast %120 : vector<1x32x100xf32> to vector<32x100xf32>
    %122 = arith.mulf %82, %121 : vector<32x100xf32>
    %cst_94 = arith.constant dense<0.000000e+00> : vector<32xf32>
    %123 = vector.multi_reduction <add>, %122, %cst_94 [1] : vector<32x100xf32> to vector<32xf32>
    %124 = vector.shape_cast %123 : vector<32xf32> to vector<32x1xf32>
    %cst_95 = arith.constant dense<0.000000e+00> : vector<1xf32>
    %125 = vector.multi_reduction <add>, %124, %cst_95 [0] : vector<32x1xf32> to vector<1xf32>
    %126 = vector.shape_cast %125 : vector<1xf32> to vector<1x1xf32>
    %c6 = arith.constant 6 : index
    %c0_96 = arith.constant 0 : index
    %c0_97 = arith.constant 0 : index
    %127 = vector.load %arg10[%c6, %c0_96, %c0_97] : memref<11x32x100xf32, #tpu.memory_space<vmem>>, vector<1x32x100xf32>
    %128 = vector.shape_cast %127 : vector<1x32x100xf32> to vector<32x100xf32>
    %129 = arith.mulf %82, %128 : vector<32x100xf32>
    %cst_98 = arith.constant dense<0.000000e+00> : vector<32xf32>
    %130 = vector.multi_reduction <add>, %129, %cst_98 [1] : vector<32x100xf32> to vector<32xf32>
    %131 = vector.shape_cast %130 : vector<32xf32> to vector<32x1xf32>
    %cst_99 = arith.constant dense<0.000000e+00> : vector<1xf32>
    %132 = vector.multi_reduction <add>, %131, %cst_99 [0] : vector<32x1xf32> to vector<1xf32>
    %133 = vector.shape_cast %132 : vector<1xf32> to vector<1x1xf32>
    %c7 = arith.constant 7 : index
    %c0_100 = arith.constant 0 : index
    %c0_101 = arith.constant 0 : index
    %134 = vector.load %arg10[%c7, %c0_100, %c0_101] : memref<11x32x100xf32, #tpu.memory_space<vmem>>, vector<1x32x100xf32>
    %135 = vector.shape_cast %134 : vector<1x32x100xf32> to vector<32x100xf32>
    %136 = arith.mulf %82, %135 : vector<32x100xf32>
    %cst_102 = arith.constant dense<0.000000e+00> : vector<32xf32>
    %137 = vector.multi_reduction <add>, %136, %cst_102 [1] : vector<32x100xf32> to vector<32xf32>
    %138 = vector.shape_cast %137 : vector<32xf32> to vector<32x1xf32>
    %cst_103 = arith.constant dense<0.000000e+00> : vector<1xf32>
    %139 = vector.multi_reduction <add>, %138, %cst_103 [0] : vector<32x1xf32> to vector<1xf32>
    %140 = vector.shape_cast %139 : vector<1xf32> to vector<1x1xf32>
    %c8 = arith.constant 8 : index
    %c0_104 = arith.constant 0 : index
    %c0_105 = arith.constant 0 : index
    %141 = vector.load %arg10[%c8, %c0_104, %c0_105] : memref<11x32x100xf32, #tpu.memory_space<vmem>>, vector<1x32x100xf32>
    %142 = vector.shape_cast %141 : vector<1x32x100xf32> to vector<32x100xf32>
    %143 = arith.mulf %82, %142 : vector<32x100xf32>
    %cst_106 = arith.constant dense<0.000000e+00> : vector<32xf32>
    %144 = vector.multi_reduction <add>, %143, %cst_106 [1] : vector<32x100xf32> to vector<32xf32>
    %145 = vector.shape_cast %144 : vector<32xf32> to vector<32x1xf32>
    %cst_107 = arith.constant dense<0.000000e+00> : vector<1xf32>
    %146 = vector.multi_reduction <add>, %145, %cst_107 [0] : vector<32x1xf32> to vector<1xf32>
    %147 = vector.shape_cast %146 : vector<1xf32> to vector<1x1xf32>
    %c9 = arith.constant 9 : index
    %c0_108 = arith.constant 0 : index
    %c0_109 = arith.constant 0 : index
    %148 = vector.load %arg10[%c9, %c0_108, %c0_109] : memref<11x32x100xf32, #tpu.memory_space<vmem>>, vector<1x32x100xf32>
    %149 = vector.shape_cast %148 : vector<1x32x100xf32> to vector<32x100xf32>
    %150 = arith.mulf %82, %149 : vector<32x100xf32>
    %cst_110 = arith.constant dense<0.000000e+00> : vector<32xf32>
    %151 = vector.multi_reduction <add>, %150, %cst_110 [1] : vector<32x100xf32> to vector<32xf32>
    %152 = vector.shape_cast %151 : vector<32xf32> to vector<32x1xf32>
    %cst_111 = arith.constant dense<0.000000e+00> : vector<1xf32>
    %153 = vector.multi_reduction <add>, %152, %cst_111 [0] : vector<32x1xf32> to vector<1xf32>
    %154 = vector.shape_cast %153 : vector<1xf32> to vector<1x1xf32>
    %c10 = arith.constant 10 : index
    %c0_112 = arith.constant 0 : index
    %c0_113 = arith.constant 0 : index
    %155 = vector.load %arg10[%c10, %c0_112, %c0_113] : memref<11x32x100xf32, #tpu.memory_space<vmem>>, vector<1x32x100xf32>
    %156 = vector.shape_cast %155 : vector<1x32x100xf32> to vector<32x100xf32>
    %157 = arith.mulf %82, %156 : vector<32x100xf32>
    %cst_114 = arith.constant dense<0.000000e+00> : vector<32xf32>
    %158 = vector.multi_reduction <add>, %157, %cst_114 [1] : vector<32x100xf32> to vector<32xf32>
    %159 = vector.shape_cast %158 : vector<32xf32> to vector<32x1xf32>
    %cst_115 = arith.constant dense<0.000000e+00> : vector<1xf32>
    %160 = vector.multi_reduction <add>, %159, %cst_115 [0] : vector<32x1xf32> to vector<1xf32>
    %161 = vector.shape_cast %160 : vector<1xf32> to vector<1x1xf32>
    %162 = tpu.concatenate %98, %105, %112, %119, %126, %133, %140, %147, %154, %161 in 1 : vector<1x1xf32>, vector<1x1xf32>, vector<1x1xf32>, vector<1x1xf32>, vector<1x1xf32>, vector<1x1xf32>, vector<1x1xf32>, vector<1x1xf32>, vector<1x1xf32>, vector<1x1xf32> -> vector<1x10xf32>
    %c0_116 = arith.constant 0 : index
    %c1_117 = arith.constant 1 : index
    %163 = vector.load %arg11[%c0_116, %c1_117] : memref<1x11xf32, #tpu.memory_space<vmem>>, vector<1x10xf32>
    %164 = arith.addf %162, %163 : vector<1x10xf32>
    %cst_118 = arith.constant dense<0xFF800000> : vector<1xf32>
    %165 = vector.multi_reduction <maximumf>, %91, %cst_118 [1] : vector<1x1xf32> to vector<1xf32>
    %166 = vector.shape_cast %165 : vector<1xf32> to vector<1x1xf32>
    %167 = arith.subf %91, %166 : vector<1x1xf32>
    %168 = math.exp %167 : vector<1x1xf32>
    %cst_119 = arith.constant dense<0.000000e+00> : vector<1xf32>
    %169 = vector.multi_reduction <add>, %168, %cst_119 [1] : vector<1x1xf32> to vector<1xf32>
    %170 = vector.shape_cast %169 : vector<1xf32> to vector<1x1xf32>
    %171 = math.log %170 : vector<1x1xf32>
    %172 = arith.subf %167, %171 : vector<1x1xf32>
    %c0_120 = arith.constant 0 : index
    %c0_121 = arith.constant 0 : index
    %173 = vector.load %arg12[%c0_120, %c0_121] : memref<2x1xf32, #tpu.memory_space<vmem>>, vector<1x1xf32>
    tpu.vector_store %arg12[%c0_120, %c0_121], %172 {strides = array<i32>} : memref<2x1xf32, #tpu.memory_space<vmem>>, vector<1x1xf32>,
    %cst_122 = arith.constant dense<0xFF800000> : vector<1xf32>
    %174 = vector.multi_reduction <maximumf>, %164, %cst_122 [1] : vector<1x10xf32> to vector<1xf32>
    %175 = vector.shape_cast %174 : vector<1xf32> to vector<1x1xf32>
    %176 = vector.broadcast %175 : vector<1x1xf32> to vector<1x10xf32>
    %177 = arith.subf %164, %176 : vector<1x10xf32>
    %178 = math.exp %177 : vector<1x10xf32>
    %cst_123 = arith.constant dense<0.000000e+00> : vector<1xf32>
    %179 = vector.multi_reduction <add>, %178, %cst_123 [1] : vector<1x10xf32> to vector<1xf32>
    %180 = vector.shape_cast %179 : vector<1xf32> to vector<1x1xf32>
    %181 = math.log %180 : vector<1x1xf32>
    %182 = vector.broadcast %181 : vector<1x1xf32> to vector<1x10xf32>
    %183 = arith.subf %177, %182 : vector<1x10xf32>
    %c0_124 = arith.constant 0 : index
    %c0_125 = arith.constant 0 : index
    %184 = vector.load %arg13[%c0_124, %c0_125] : memref<2x10xf32, #tpu.memory_space<vmem>>, vector<1x10xf32>
    tpu.vector_store %arg13[%c0_124, %c0_125], %183 {strides = array<i32>} : memref<2x10xf32, #tpu.memory_space<vmem>>, vector<1x10xf32>,
    %c0_126 = arith.constant 0 : index
    %c102 = arith.constant 102 : index
    %185 = vector.load %arg17[%c0_126, %c102] : memref<32x202xf32, #tpu.memory_space<vmem>>, vector<32x100xf32>
    %c0_127 = arith.constant 0 : index
    %c0_128 = arith.constant 0 : index
    %c0_129 = arith.constant 0 : index
    %186 = vector.load %arg10[%c0_127, %c0_128, %c0_129] : memref<11x32x100xf32, #tpu.memory_space<vmem>>, vector<1x32x100xf32>
    %187 = vector.shape_cast %186 : vector<1x32x100xf32> to vector<32x100xf32>
    %188 = arith.mulf %185, %187 : vector<32x100xf32>
    %cst_130 = arith.constant dense<0.000000e+00> : vector<32xf32>
    %189 = vector.multi_reduction <add>, %188, %cst_130 [1] : vector<32x100xf32> to vector<32xf32>
    %190 = vector.shape_cast %189 : vector<32xf32> to vector<32x1xf32>
    %cst_131 = arith.constant dense<0.000000e+00> : vector<1xf32>
    %191 = vector.multi_reduction <add>, %190, %cst_131 [0] : vector<32x1xf32> to vector<1xf32>
    %192 = vector.shape_cast %191 : vector<1xf32> to vector<1x1xf32>
    %c0_132 = arith.constant 0 : index
    %c0_133 = arith.constant 0 : index
    %193 = vector.load %arg11[%c0_132, %c0_133] : memref<1x11xf32, #tpu.memory_space<vmem>>, vector<1x1xf32>
    %194 = arith.addf %192, %193 : vector<1x1xf32>
    %c1_134 = arith.constant 1 : index
    %c0_135 = arith.constant 0 : index
    %c0_136 = arith.constant 0 : index
    %195 = vector.load %arg10[%c1_134, %c0_135, %c0_136] : memref<11x32x100xf32, #tpu.memory_space<vmem>>, vector<1x32x100xf32>
    %196 = vector.shape_cast %195 : vector<1x32x100xf32> to vector<32x100xf32>
    %197 = arith.mulf %185, %196 : vector<32x100xf32>
    %cst_137 = arith.constant dense<0.000000e+00> : vector<32xf32>
    %198 = vector.multi_reduction <add>, %197, %cst_137 [1] : vector<32x100xf32> to vector<32xf32>
    %199 = vector.shape_cast %198 : vector<32xf32> to vector<32x1xf32>
    %cst_138 = arith.constant dense<0.000000e+00> : vector<1xf32>
    %200 = vector.multi_reduction <add>, %199, %cst_138 [0] : vector<32x1xf32> to vector<1xf32>
    %201 = vector.shape_cast %200 : vector<1xf32> to vector<1x1xf32>
    %c2_139 = arith.constant 2 : index
    %c0_140 = arith.constant 0 : index
    %c0_141 = arith.constant 0 : index
    %202 = vector.load %arg10[%c2_139, %c0_140, %c0_141] : memref<11x32x100xf32, #tpu.memory_space<vmem>>, vector<1x32x100xf32>
    %203 = vector.shape_cast %202 : vector<1x32x100xf32> to vector<32x100xf32>
    %204 = arith.mulf %185, %203 : vector<32x100xf32>
    %cst_142 = arith.constant dense<0.000000e+00> : vector<32xf32>
    %205 = vector.multi_reduction <add>, %204, %cst_142 [1] : vector<32x100xf32> to vector<32xf32>
    %206 = vector.shape_cast %205 : vector<32xf32> to vector<32x1xf32>
    %cst_143 = arith.constant dense<0.000000e+00> : vector<1xf32>
    %207 = vector.multi_reduction <add>, %206, %cst_143 [0] : vector<32x1xf32> to vector<1xf32>
    %208 = vector.shape_cast %207 : vector<1xf32> to vector<1x1xf32>
    %c3_144 = arith.constant 3 : index
    %c0_145 = arith.constant 0 : index
    %c0_146 = arith.constant 0 : index
    %209 = vector.load %arg10[%c3_144, %c0_145, %c0_146] : memref<11x32x100xf32, #tpu.memory_space<vmem>>, vector<1x32x100xf32>
    %210 = vector.shape_cast %209 : vector<1x32x100xf32> to vector<32x100xf32>
    %211 = arith.mulf %185, %210 : vector<32x100xf32>
    %cst_147 = arith.constant dense<0.000000e+00> : vector<32xf32>
    %212 = vector.multi_reduction <add>, %211, %cst_147 [1] : vector<32x100xf32> to vector<32xf32>
    %213 = vector.shape_cast %212 : vector<32xf32> to vector<32x1xf32>
    %cst_148 = arith.constant dense<0.000000e+00> : vector<1xf32>
    %214 = vector.multi_reduction <add>, %213, %cst_148 [0] : vector<32x1xf32> to vector<1xf32>
    %215 = vector.shape_cast %214 : vector<1xf32> to vector<1x1xf32>
    %c4_149 = arith.constant 4 : index
    %c0_150 = arith.constant 0 : index
    %c0_151 = arith.constant 0 : index
    %216 = vector.load %arg10[%c4_149, %c0_150, %c0_151] : memref<11x32x100xf32, #tpu.memory_space<vmem>>, vector<1x32x100xf32>
    %217 = vector.shape_cast %216 : vector<1x32x100xf32> to vector<32x100xf32>
    %218 = arith.mulf %185, %217 : vector<32x100xf32>
    %cst_152 = arith.constant dense<0.000000e+00> : vector<32xf32>
    %219 = vector.multi_reduction <add>, %218, %cst_152 [1] : vector<32x100xf32> to vector<32xf32>
    %220 = vector.shape_cast %219 : vector<32xf32> to vector<32x1xf32>
    %cst_153 = arith.constant dense<0.000000e+00> : vector<1xf32>
    %221 = vector.multi_reduction <add>, %220, %cst_153 [0] : vector<32x1xf32> to vector<1xf32>
    %222 = vector.shape_cast %221 : vector<1xf32> to vector<1x1xf32>
    %c5_154 = arith.constant 5 : index
    %c0_155 = arith.constant 0 : index
    %c0_156 = arith.constant 0 : index
    %223 = vector.load %arg10[%c5_154, %c0_155, %c0_156] : memref<11x32x100xf32, #tpu.memory_space<vmem>>, vector<1x32x100xf32>
    %224 = vector.shape_cast %223 : vector<1x32x100xf32> to vector<32x100xf32>
    %225 = arith.mulf %185, %224 : vector<32x100xf32>
    %cst_157 = arith.constant dense<0.000000e+00> : vector<32xf32>
    %226 = vector.multi_reduction <add>, %225, %cst_157 [1] : vector<32x100xf32> to vector<32xf32>
    %227 = vector.shape_cast %226 : vector<32xf32> to vector<32x1xf32>
    %cst_158 = arith.constant dense<0.000000e+00> : vector<1xf32>
    %228 = vector.multi_reduction <add>, %227, %cst_158 [0] : vector<32x1xf32> to vector<1xf32>
    %229 = vector.shape_cast %228 : vector<1xf32> to vector<1x1xf32>
    %c6_159 = arith.constant 6 : index
    %c0_160 = arith.constant 0 : index
    %c0_161 = arith.constant 0 : index
    %230 = vector.load %arg10[%c6_159, %c0_160, %c0_161] : memref<11x32x100xf32, #tpu.memory_space<vmem>>, vector<1x32x100xf32>
    %231 = vector.shape_cast %230 : vector<1x32x100xf32> to vector<32x100xf32>
    %232 = arith.mulf %185, %231 : vector<32x100xf32>
    %cst_162 = arith.constant dense<0.000000e+00> : vector<32xf32>
    %233 = vector.multi_reduction <add>, %232, %cst_162 [1] : vector<32x100xf32> to vector<32xf32>
    %234 = vector.shape_cast %233 : vector<32xf32> to vector<32x1xf32>
    %cst_163 = arith.constant dense<0.000000e+00> : vector<1xf32>
    %235 = vector.multi_reduction <add>, %234, %cst_163 [0] : vector<32x1xf32> to vector<1xf32>
    %236 = vector.shape_cast %235 : vector<1xf32> to vector<1x1xf32>
    %c7_164 = arith.constant 7 : index
    %c0_165 = arith.constant 0 : index
    %c0_166 = arith.constant 0 : index
    %237 = vector.load %arg10[%c7_164, %c0_165, %c0_166] : memref<11x32x100xf32, #tpu.memory_space<vmem>>, vector<1x32x100xf32>
    %238 = vector.shape_cast %237 : vector<1x32x100xf32> to vector<32x100xf32>
    %239 = arith.mulf %185, %238 : vector<32x100xf32>
    %cst_167 = arith.constant dense<0.000000e+00> : vector<32xf32>
    %240 = vector.multi_reduction <add>, %239, %cst_167 [1] : vector<32x100xf32> to vector<32xf32>
    %241 = vector.shape_cast %240 : vector<32xf32> to vector<32x1xf32>
    %cst_168 = arith.constant dense<0.000000e+00> : vector<1xf32>
    %242 = vector.multi_reduction <add>, %241, %cst_168 [0] : vector<32x1xf32> to vector<1xf32>
    %243 = vector.shape_cast %242 : vector<1xf32> to vector<1x1xf32>
    %c8_169 = arith.constant 8 : index
    %c0_170 = arith.constant 0 : index
    %c0_171 = arith.constant 0 : index
    %244 = vector.load %arg10[%c8_169, %c0_170, %c0_171] : memref<11x32x100xf32, #tpu.memory_space<vmem>>, vector<1x32x100xf32>
    %245 = vector.shape_cast %244 : vector<1x32x100xf32> to vector<32x100xf32>
    %246 = arith.mulf %185, %245 : vector<32x100xf32>
    %cst_172 = arith.constant dense<0.000000e+00> : vector<32xf32>
    %247 = vector.multi_reduction <add>, %246, %cst_172 [1] : vector<32x100xf32> to vector<32xf32>
    %248 = vector.shape_cast %247 : vector<32xf32> to vector<32x1xf32>
    %cst_173 = arith.constant dense<0.000000e+00> : vector<1xf32>
    %249 = vector.multi_reduction <add>, %248, %cst_173 [0] : vector<32x1xf32> to vector<1xf32>
    %250 = vector.shape_cast %249 : vector<1xf32> to vector<1x1xf32>
    %c9_174 = arith.constant 9 : index
    %c0_175 = arith.constant 0 : index
    %c0_176 = arith.constant 0 : index
    %251 = vector.load %arg10[%c9_174, %c0_175, %c0_176] : memref<11x32x100xf32, #tpu.memory_space<vmem>>, vector<1x32x100xf32>
    %252 = vector.shape_cast %251 : vector<1x32x100xf32> to vector<32x100xf32>
    %253 = arith.mulf %185, %252 : vector<32x100xf32>
    %cst_177 = arith.constant dense<0.000000e+00> : vector<32xf32>
    %254 = vector.multi_reduction <add>, %253, %cst_177 [1] : vector<32x100xf32> to vector<32xf32>
    %255 = vector.shape_cast %254 : vector<32xf32> to vector<32x1xf32>
    %cst_178 = arith.constant dense<0.000000e+00> : vector<1xf32>
    %256 = vector.multi_reduction <add>, %255, %cst_178 [0] : vector<32x1xf32> to vector<1xf32>
    %257 = vector.shape_cast %256 : vector<1xf32> to vector<1x1xf32>
    %c10_179 = arith.constant 10 : index
    %c0_180 = arith.constant 0 : index
    %c0_181 = arith.constant 0 : index
    %258 = vector.load %arg10[%c10_179, %c0_180, %c0_181] : memref<11x32x100xf32, #tpu.memory_space<vmem>>, vector<1x32x100xf32>
    %259 = vector.shape_cast %258 : vector<1x32x100xf32> to vector<32x100xf32>
    %260 = arith.mulf %185, %259 : vector<32x100xf32>
    %cst_182 = arith.constant dense<0.000000e+00> : vector<32xf32>
    %261 = vector.multi_reduction <add>, %260, %cst_182 [1] : vector<32x100xf32> to vector<32xf32>
    %262 = vector.shape_cast %261 : vector<32xf32> to vector<32x1xf32>
    %cst_183 = arith.constant dense<0.000000e+00> : vector<1xf32>
    %263 = vector.multi_reduction <add>, %262, %cst_183 [0] : vector<32x1xf32> to vector<1xf32>
    %264 = vector.shape_cast %263 : vector<1xf32> to vector<1x1xf32>
    %265 = tpu.concatenate %201, %208, %215, %222, %229, %236, %243, %250, %257, %264 in 1 : vector<1x1xf32>, vector<1x1xf32>, vector<1x1xf32>, vector<1x1xf32>, vector<1x1xf32>, vector<1x1xf32>, vector<1x1xf32>, vector<1x1xf32>, vector<1x1xf32>, vector<1x1xf32> -> vector<1x10xf32>
    %c0_184 = arith.constant 0 : index
    %c1_185 = arith.constant 1 : index
    %266 = vector.load %arg11[%c0_184, %c1_185] : memref<1x11xf32, #tpu.memory_space<vmem>>, vector<1x10xf32>
    %267 = arith.addf %265, %266 : vector<1x10xf32>
    %cst_186 = arith.constant dense<0xFF800000> : vector<1xf32>
    %268 = vector.multi_reduction <maximumf>, %194, %cst_186 [1] : vector<1x1xf32> to vector<1xf32>
    %269 = vector.shape_cast %268 : vector<1xf32> to vector<1x1xf32>
    %270 = arith.subf %194, %269 : vector<1x1xf32>
    %271 = math.exp %270 : vector<1x1xf32>
    %cst_187 = arith.constant dense<0.000000e+00> : vector<1xf32>
    %272 = vector.multi_reduction <add>, %271, %cst_187 [1] : vector<1x1xf32> to vector<1xf32>
    %273 = vector.shape_cast %272 : vector<1xf32> to vector<1x1xf32>
    %274 = math.log %273 : vector<1x1xf32>
    %275 = arith.subf %270, %274 : vector<1x1xf32>
    %c1_188 = arith.constant 1 : index
    %c0_189 = arith.constant 0 : index
    %276 = vector.load %arg12[%c1_188, %c0_189] : memref<2x1xf32, #tpu.memory_space<vmem>>, vector<1x1xf32>
    tpu.vector_store %arg12[%c1_188, %c0_189], %275 {strides = array<i32>} : memref<2x1xf32, #tpu.memory_space<vmem>>, vector<1x1xf32>,
    %cst_190 = arith.constant dense<0xFF800000> : vector<1xf32>
    %277 = vector.multi_reduction <maximumf>, %267, %cst_190 [1] : vector<1x10xf32> to vector<1xf32>
    %278 = vector.shape_cast %277 : vector<1xf32> to vector<1x1xf32>
    %279 = vector.broadcast %278 : vector<1x1xf32> to vector<1x10xf32>
    %280 = arith.subf %267, %279 : vector<1x10xf32>
    %281 = math.exp %280 : vector<1x10xf32>
    %cst_191 = arith.constant dense<0.000000e+00> : vector<1xf32>
    %282 = vector.multi_reduction <add>, %281, %cst_191 [1] : vector<1x10xf32> to vector<1xf32>
    %283 = vector.shape_cast %282 : vector<1xf32> to vector<1x1xf32>
    %284 = math.log %283 : vector<1x1xf32>
    %285 = vector.broadcast %284 : vector<1x1xf32> to vector<1x10xf32>
    %286 = arith.subf %280, %285 : vector<1x10xf32>
    %c1_192 = arith.constant 1 : index
    %c0_193 = arith.constant 0 : index
    %287 = vector.load %arg13[%c1_192, %c0_193] : memref<2x10xf32, #tpu.memory_space<vmem>>, vector<1x10xf32>
    tpu.vector_store %arg13[%c1_192, %c0_193], %286 {strides = array<i32>} : memref<2x10xf32, #tpu.memory_space<vmem>>, vector<1x10xf32>,
    return
  }
}

</mosaic_0001>

<llo_original>
// kernel: tpu_custom_call.1
$region0: #{tpu_custom_call.1}
  #allocation0 [shape = 'u32[]', space=smem, size = 0x4, offset = 0x4, fixed_abs, tag = 'smem constant byte address 0x4 - core index']
  #allocation1 [shape = 'u32[144,128]{1,0:T(1,128)}', space=vmem, size = 0x12000, scoped, tag = 'internal scratch']
  #allocation2 [shape = 'f32[4,204]{1,0:T(4,128)}', space=vmem, size = 0x1000, scoped, tag = 'scratch operand']
  #allocation3 [shape = 'f32[32,204]{1,0:T(8,128)}', space=vmem, size = 0x8000, scoped, tag = 'scratch operand']
  #allocation4 [shape = 'f32[32,204]{1,0:T(8,128)}', space=vmem, size = 0x8000, scoped, tag = 'scratch operand']
  #allocation5 [shape = 'f32[32,202]{1,0:T(8,128)}', space=vmem, size = 0x8000, scoped, tag = 'scratch operand']
  %s0 = inlined_call_operand.vmem [shape: f32[2,4,100], index: 0, kind: input, shape index: {}]
  %s1 = inlined_call_operand.vmem [shape: f32[32,12], index: 1, kind: input, shape index: {}]
  %s2 = inlined_call_operand.vmem [shape: f32[32,1], index: 2, kind: input, shape index: {}]
  %s3 = inlined_call_operand.vmem [shape: f32[32,1], index: 3, kind: input, shape index: {}]
  %s4 = inlined_call_operand.vmem [shape: f32[32,96], index: 4, kind: input, shape index: {}]
  %s5 = inlined_call_operand.vmem [shape: f32[32,1], index: 5, kind: input, shape index: {}]
  %s6 = inlined_call_operand.vmem [shape: f32[32,1], index: 6, kind: input, shape index: {}]
  %s7 = inlined_call_operand.vmem [shape: f32[32,96], index: 7, kind: input, shape index: {}]
  %s8 = inlined_call_operand.vmem [shape: f32[32,1], index: 8, kind: input, shape index: {}]
  %s9 = inlined_call_operand.vmem [shape: f32[32,1], index: 9, kind: input, shape index: {}]
  %s10 = inlined_call_operand.hbm [shape: f32[11,32,100], index: 10, kind: input, shape index: {}]
  %s11 = inlined_call_operand.vmem [shape: f32[1,11], index: 11, kind: input, shape index: {}]
  %s12 = inlined_call_operand.vmem [shape: f32[2,1], index: 12, kind: output, shape index: {0}]
  %s13 = inlined_call_operand.hbm [shape: f32[2,10], index: 13, kind: output, shape index: {1}]
  %14 = xla_tuple %s12, %s13
  %s15 = sld [smem:[#allocation0]]
  $region70: #{tpu_custom_call.1} parent=0
    _
  %s17 = ssub.s32 1, %s15
  %s18 = scalar_select 0, %s17, %s15
  $region1: #{tpu_custom_call.1} parent=0
    #allocation6 [shape = 'u8[180224]{0}', space=vmem, size = 0x2c000, scoped, tag = 'input window, operand 10, single buffered']
    #allocation7 [shape = 's32[1]{0}', space=sflag, size = 0x4, scoped, tag = 'scoped memory for tpu_custom_call.1']
    #allocation8 [shape = 's32[1]{0}', space=sflag, size = 0x4, scoped, tag = 'scoped memory for tpu_custom_call.1']
    #allocation9 [shape = 'u8[1024]{0}', space=vmem, size = 0x400, scoped, tag = 'output window, operand 1, single buffered']
    %19 = vsyncpa [#allocation7], 0
    %20 = vsyncpa [#allocation8], 0
    // Predicated region
    $region2: #{tpu_custom_call.1} parent=1 // pred_check
      _
    $region3: #{tpu_custom_call.1} parent=1 // pred_check_branch
      %22 = sbr.rel (0) target = $region5
    $region4: #{tpu_custom_call.1} parent=1 // pred_region
      _
    $region5: #{tpu_custom_call.1} parent=1 // pred_fallthru
      _
    // Predicated region
    $region6: #{tpu_custom_call.1} parent=1 // pred_check
      _
    $region7: #{tpu_custom_call.1} parent=1 // pred_check_branch
      %24 = sbr.rel (0) target = $region9
    $region8: #{tpu_custom_call.1} parent=1 // pred_region
      _
    $region9: #{tpu_custom_call.1} parent=1 // pred_fallthru
      _
    // Predicated region
    $region10: #{tpu_custom_call.1} parent=1 // pred_check
      _
    $region11: #{tpu_custom_call.1} parent=1 // pred_check_branch
      %26 = sbr.rel (0) target = $region13
    $region12: #{tpu_custom_call.1} parent=1 // pred_region
      _
    $region13: #{tpu_custom_call.1} parent=1 // pred_fallthru
      _
    // Predicated region
    $region14: #{tpu_custom_call.1} parent=1 // pred_check
      _
    $region15: #{tpu_custom_call.1} parent=1 // pred_check_branch
      %28 = sbr.rel (0) target = $region17
    $region16: #{tpu_custom_call.1} parent=1 // pred_region
      _
    $region17: #{tpu_custom_call.1} parent=1 // pred_fallthru
      _
    // Predicated region
    $region18: #{tpu_custom_call.1} parent=1 // pred_check
      _
    $region19: #{tpu_custom_call.1} parent=1 // pred_check_branch
      %30 = sbr.rel (0) target = $region21
    $region20: #{tpu_custom_call.1} parent=1 // pred_region
      _
    $region21: #{tpu_custom_call.1} parent=1 // pred_fallthru
      _
    // Predicated region
    $region22: #{tpu_custom_call.1} parent=1 // pred_check
      _
    $region23: #{tpu_custom_call.1} parent=1 // pred_check_branch
      %32 = sbr.rel (0) target = $region25
    $region24: #{tpu_custom_call.1} parent=1 // pred_region
      _
    $region25: #{tpu_custom_call.1} parent=1 // pred_fallthru
      _
    // Predicated region
    $region26: #{tpu_custom_call.1} parent=1 // pred_check
      _
    $region27: #{tpu_custom_call.1} parent=1 // pred_check_branch
      %34 = sbr.rel (0) target = $region29
    $region28: #{tpu_custom_call.1} parent=1 // pred_region
      _
    $region29: #{tpu_custom_call.1} parent=1 // pred_fallthru
      _
    // Predicated region
    $region30: #{tpu_custom_call.1} parent=1 // pred_check
      _
    $region31: #{tpu_custom_call.1} parent=1 // pred_check_branch
      %36 = sbr.rel (0) target = $region33
    $region32: #{tpu_custom_call.1} parent=1 // pred_region
      _
    $region33: #{tpu_custom_call.1} parent=1 // pred_fallthru
      _
    // Predicated region
    $region34: #{tpu_custom_call.1} parent=1 // pred_check
      _
    $region35: #{tpu_custom_call.1} parent=1 // pred_check_branch
      %38 = sbr.rel (0) target = $region37
    $region36: #{tpu_custom_call.1} parent=1 // pred_region
      _
    $region37: #{tpu_custom_call.1} parent=1 // pred_fallthru
      _
    // Predicated region
    $region38: #{tpu_custom_call.1} parent=1 // pred_check
      _
    $region39: #{tpu_custom_call.1} parent=1 // pred_check_branch
      %40 = sbr.rel (0) target = $region41
    $region40: #{tpu_custom_call.1} parent=1 // pred_region
      _
    $region41: #{tpu_custom_call.1} parent=1 // pred_fallthru
      _
    // Predicated region
    $region42: #{tpu_custom_call.1} parent=1 // pred_check
      _
    $region43: #{tpu_custom_call.1} parent=1 // pred_check_branch
      %42 = sbr.rel (0) target = $region45
    $region44: #{tpu_custom_call.1} parent=1 // pred_region
      %s44 = ssub.s32 5632, 5632
      %45 = vsyncadd [#allocation7], %s44
      %s46 = sshll.u32 [#allocation6], 4
      %s47 = int_to_ptr.vmem [resolvable:$true] %s46
      %52 = dma.hbm_to_vmem [thread:$0]  %s10, 5632, %s47, [#allocation7], 128, 128, 8
    $region45: #{tpu_custom_call.1} parent=1 // pred_fallthru
      _
    // Predicated region
    $region46: #{tpu_custom_call.1} parent=1 // pred_check
      _
    $region47: #{tpu_custom_call.1} parent=1 // pred_check_branch
      %54 = sbr.rel (0) target = $region49
    $region48: #{tpu_custom_call.1} parent=1 // pred_region
      _
    $region49: #{tpu_custom_call.1} parent=1 // pred_fallthru
      _
    // Predicated region
    $region50: #{tpu_custom_call.1} parent=1 // pred_check
      _
    $region51: #{tpu_custom_call.1} parent=1 // pred_check_branch
      %56 = sbr.rel (0) target = $region53
    $region52: #{tpu_custom_call.1} parent=1 // pred_region
      %57 = dma.done [#allocation7], 5632
    $region53: #{tpu_custom_call.1} parent=1 // pred_fallthru
      _
    %vm58 = vcmask 1043456
    %vm59 = vcmask 621572
    %vm60 = vmor %vm59, %vm58
    %61 = vst.msk [vmem:[#allocation2] sm:$0xff] %vm60, 0.0
    %v62 = vld [vmem:[%s0] sm:$0xf]
    %64 = vrot.lane.b32.xlu0 %v62, 1
    %v65 = vpop.permute.xlu0 %64
    %vm67 = vcmask 822280
    %68 = vst.msk [vmem:[#allocation2] sm:$0xf] %vm67, %v65
    %s69 = scalar_lea.vmem %s0, 4
    %v70 = vld [vmem:[%s69] sm:$0xf]
    %72 = vrot.lane.b32.xlu0 %v70, 103
    %v73 = vpop.permute.xlu0 %72
    %v74 = vrot.slane %v73, 4
    %vm75 = vcmask 842752
    %v76 = vsel %vm75, %v74, %v73
    %vm78 = vcmask 1044280
    %vm79 = vcmask 613380
    %vm80 = vmor %vm79, %vm78
    %81 = vst.msk [vmem:[#allocation2] sm:$0xff] %vm80, %v76
    %v82 = vlaneseq
    %v83 = vand.u32 %v82, 127
    %v84 = vadd.s32 %v83, 128
    %vm85 = vcmp.lt.s32.totalorder %v83, 0
    %vm86 = vcmp.lt.s32.totalorder %v84, 0
    %vm87 = vcmp.ge.s32.totalorder %v83, 100
    %vm88 = vcmp.ge.s32.totalorder %v84, 100
    %vm89 = vcmp.le.s32.totalorder %v83, 101
    %vm90 = vcmp.le.s32.totalorder %v84, 101
    %vm91 = vmand %vm87, %vm89
    %vm92 = vmand %vm88, %vm90
    %vm93 = vmor %vm85, %vm91
    %vm94 = vmor %vm86, %vm92
    %vm95 = vcmp.ge.s32.totalorder %v83, 202
    %vm96 = vcmp.ge.s32.totalorder %v84, 202
    %vm97 = vcmp.le.s32.totalorder %v83, 203
    %vm98 = vcmp.le.s32.totalorder %v84, 203
    %vm99 = vmand %vm95, %vm97
    %vm100 = vmand %vm96, %vm98
    %vm101 = vmor %vm93, %vm99
    %vm102 = vmor %vm94, %vm100
    %vm103 = vmxor %vm101, 1
    %vm104 = vmxor %vm102, 1
    %v105 = vld [vmem:[#allocation2] sm:$0xff]
    %v107 = vcombine.high %v105, %v105
    %v109 = vcombine.low %v105, %v105
    %110 = vrot.lane.b32.xlu0 %v109, 127
    %v111 = vpop.permute.xlu0 %110
    %112 = vrot.lane.b32.xlu0 %v105, 127
    %v113 = vpop.permute.xlu0 %112
    %vm114 = vcmask 1039360
    %v115 = vsel %vm114, %v111, %v113
    %118 = vrot.lane.b32.xlu0 %v105, 126
    %v119 = vpop.permute.xlu0 %118
    %120 = vrot.lane.b32.xlu0 %v107, 126
    %v121 = vpop.permute.xlu0 %120
    %vm122 = vcmask 1031168
    %v123 = vsel %vm122, %v119, %v121
    %v124 = vsel %vm58, %v105, %v115
    %v125 = vsel %vm58, %v107, %v113
    %v126 = vld [vmem:[%s1] sm:$0xff]
    %v127 = vld [vmem:[%s1 + $0x8] sm:$0xff]
    %v128 = vld [vmem:[%s1 + $0x10] sm:$0xff]
    %v129 = vld [vmem:[%s1 + $0x18] sm:$0xff]
    %vm130 = vcmask 97280
    %v132 = vsel %vm130, %v126, 0
    %v135 = vsel %vm130, %v127, 0
    %v138 = vsel %vm130, %v128, 0
    %v141 = vsel %vm130, %v129, 0
    %v143 = vsel %vm58, %v123, 0
    %v145 = vsel %vm58, %v121, 0
    %147 = vmatprep.subr.mxu0 %v125
    %148 = vmatpush1.msra.mxu0 %v124
    %149 = vmatprep.subr.mxu0 %v145
    %150 = vmatpush1.msra.mxu0 %v143
    %151 = vmatprep.subr.mxu0 0.0
    %152 = vmatpush1.msra.mxu0 0.0
    %153 = vmatprep.subr.mxu0 0.0
    %154 = vmatpush1.msra.mxu0 0.0
    %155 = vmatprep.subr.mxu0 0.0
    %156 = vmatpush1.msra.mxu0 0.0
    %157 = vmatprep.subr.mxu0 0.0
    %158 = vmatpush1.msra.mxu0 0.0
    %159 = vmatprep.subr.mxu0 0.0
    %160 = vmatpush1.msra.mxu0 0.0
    %161 = vmatprep.subr.mxu0 0.0
    %162 = vmatpush1.msra.mxu0 0.0
    %163 = vmatprep.subr.mxu0 0.0
    %164 = vmatpush1.msra.mxu0 0.0
    %165 = vmatprep.subr.mxu0 0.0
    %166 = vmatpush1.msra.mxu0 0.0
    %167 = vmatprep.subr.mxu0 0.0
    %168 = vmatpush1.msra.mxu0 0.0
    %169 = vmatprep.subr.mxu0 0.0
    %170 = vmatpush1.msra.mxu0 0.0
    %171 = vmatprep.subr.mxu0 0.0
    %172 = vmatpush1.msra.mxu0 0.0
    %173 = vmatprep.subr.mxu0 0.0
    %174 = vmatpush1.msra.mxu0 0.0
    %175 = vmatprep.subr.mxu0 0.0
    %176 = vmatpush1.msra.mxu0 0.0
    %177 = vmatprep.subr.mxu0 0.0
    %178 = vmatpush1.msra.mxu0 0.0
    %179 = vmatprep.subr.mxu0 0.0
    %180 = vmatpush1.msra.mxu0 0.0
    %181 = vmatprep.subr.mxu0 0.0
    %182 = vmatpush1.msra.mxu0 0.0
    %183 = vmatprep.subr.mxu0 0.0
    %184 = vmatpush1.msra.mxu0 0.0
    %185 = vmatprep.subr.mxu0 0.0
    %186 = vmatpush1.msra.mxu0 0.0
    %187 = vmatprep.subr.mxu0 0.0
    %188 = vmatpush1.msra.mxu0 0.0
    %189 = vmatprep.subr.mxu0 0.0
    %190 = vmatpush1.msra.mxu0 0.0
    %191 = vmatprep.subr.mxu0 0.0
    %192 = vmatpush1.msra.mxu0 0.0
    %193 = vmatprep.subr.mxu0 0.0
    %194 = vmatpush1.msra.mxu0 0.0
    %195 = vmatprep.subr.mxu0 0.0
    %196 = vmatpush1.msra.mxu0 0.0
    %197 = vmatprep.subr.mxu0 0.0
    %198 = vmatpush1.msra.mxu0 0.0
    %199 = vmatprep.subr.mxu0 0.0
    %200 = vmatpush1.msra.mxu0 0.0
    %201 = vmatprep.subr.mxu0 0.0
    %202 = vmatpush1.msra.mxu0 0.0
    %203 = vmatprep.subr.mxu0 0.0
    %204 = vmatpush1.msra.mxu0 0.0
    %205 = vmatprep.subr.mxu0 0.0
    %206 = vmatpush1.msra.mxu0 0.0
    %207 = vmatprep.subr.mxu0 0.0
    %208 = vmatpush1.msra.mxu0 0.0
    %209 = vmatprep.subr.mxu0 0.0
    %210 = vmatpush1.msra.mxu0 0.0
    %211 = vmatprep.mubr.f32.mxu0 0.0
    %212 = vmatmul.mubr.f32.gmra.mrb[0].mxu0 %v132
    %v213 = vpop.f32.mrb[0].mxu0
    %v214 = vadd.f32 0.0, %v213
    %v215 = vpop.f32.mrb[0].mxu0
    %v216 = vadd.f32 0.0, %v215
    %217 = vmatprep.mubr.f32.mxu0 0.0
    %218 = vmatmul.mubr.f32.gmra.mrb[0].mxu0 %v135
    %v219 = vpop.f32.mrb[0].mxu0
    %v220 = vadd.f32 0.0, %v219
    %v221 = vpop.f32.mrb[0].mxu0
    %v222 = vadd.f32 0.0, %v221
    %223 = vmatprep.mubr.f32.mxu0 0.0
    %224 = vmatmul.mubr.f32.gmra.mrb[0].mxu0 %v138
    %v225 = vpop.f32.mrb[0].mxu0
    %v226 = vadd.f32 0.0, %v225
    %v227 = vpop.f32.mrb[0].mxu0
    %v228 = vadd.f32 0.0, %v227
    %229 = vmatprep.mubr.f32.mxu0 0.0
    %230 = vmatmul.mubr.f32.gmra.mrb[0].mxu0 %v141
    %v231 = vpop.f32.mrb[0].mxu0
    %v232 = vadd.f32 0.0, %v231
    %v233 = vpop.f32.mrb[0].mxu0
    %v234 = vadd.f32 0.0, %v233
    %235 = vdwg.mxu0
    %v236 = vld [vmem:[%s2] sm:$0xff]
    %v237 = vld [vmem:[%s2 + $0x8] sm:$0xff]
    %v238 = vld [vmem:[%s2 + $0x10] sm:$0xff]
    %v239 = vld [vmem:[%s2 + $0x18] sm:$0xff]
    %241 = vset.pattern.permute.xlu0 0
    %242 = vperm.xlu0 %241, %v236
    %v243 = vpop.permute.xlu0 %242
    %246 = vset.pattern.permute.xlu0 0
    %247 = vperm.xlu0 %246, %v237
    %v248 = vpop.permute.xlu0 %247
    %251 = vset.pattern.permute.xlu0 0
    %252 = vperm.xlu0 %251, %v238
    %v253 = vpop.permute.xlu0 %252
    %256 = vset.pattern.permute.xlu0 0
    %257 = vperm.xlu0 %256, %v239
    %v258 = vpop.permute.xlu0 %257
    %v260 = vmul.f32 %v214, %v243
    %v261 = vmul.f32 %v216, %v243
    %v262 = vmul.f32 %v220, %v248
    %v263 = vmul.f32 %v222, %v248
    %v264 = vmul.f32 %v226, %v253
    %v265 = vmul.f32 %v228, %v253
    %v266 = vmul.f32 %v232, %v258
    %v267 = vmul.f32 %v234, %v258
    %v268 = vld [vmem:[%s3] sm:$0xff]
    %v269 = vld [vmem:[%s3 + $0x8] sm:$0xff]
    %v270 = vld [vmem:[%s3 + $0x10] sm:$0xff]
    %v271 = vld [vmem:[%s3 + $0x18] sm:$0xff]
    %273 = vset.pattern.permute.xlu0 0
    %274 = vperm.xlu0 %273, %v268
    %v275 = vpop.permute.xlu0 %274
    %278 = vset.pattern.permute.xlu0 0
    %279 = vperm.xlu0 %278, %v269
    %v280 = vpop.permute.xlu0 %279
    %283 = vset.pattern.permute.xlu0 0
    %284 = vperm.xlu0 %283, %v270
    %v285 = vpop.permute.xlu0 %284
    %288 = vset.pattern.permute.xlu0 0
    %289 = vperm.xlu0 %288, %v271
    %v290 = vpop.permute.xlu0 %289
    %v292 = vadd.f32 %v260, %v275
    %v293 = vadd.f32 %v261, %v275
    %v294 = vadd.f32 %v262, %v280
    %v295 = vadd.f32 %v263, %v280
    %v296 = vadd.f32 %v264, %v285
    %v297 = vadd.f32 %v265, %v285
    %v298 = vadd.f32 %v266, %v290
    %v299 = vadd.f32 %v267, %v290
    %v300 = vmax.f32 %v292, 0.0
    %v301 = vmax.f32 %v293, 0.0
    %v302 = vmax.f32 %v294, 0.0
    %v303 = vmax.f32 %v295, 0.0
    %v304 = vmax.f32 %v296, 0.0
    %v305 = vmax.f32 %v297, 0.0
    %v306 = vmax.f32 %v298, 0.0
    %v307 = vmax.f32 %v299, 0.0
    %308 = vst [vmem:[#allocation3] sm:$0xff] 0.0
    %vm309 = vcmask 621568
    %310 = vst.msk [vmem:[#allocation3 + $0x8] sm:$0xff] %vm309, 0.0
    %311 = vst [vmem:[#allocation3 + $0x10] sm:$0xff] 0.0
    %312 = vst.msk [vmem:[#allocation3 + $0x18] sm:$0xff] %vm309, 0.0
    %313 = vst [vmem:[#allocation3 + $0x20] sm:$0xff] 0.0
    %314 = vst.msk [vmem:[#allocation3 + $0x28] sm:$0xff] %vm309, 0.0
    %315 = vst [vmem:[#allocation3 + $0x30] sm:$0xff] 0.0
    %316 = vst.msk [vmem:[#allocation3 + $0x38] sm:$0xff] %vm309, 0.0
    %v317 = vsel %vm103, 1, 0
    %v318 = vsel %vm104, 1, 0
    %vm319 = vcmp.eq.s32.totalorder %v317, 1
    %vm320 = vcmp.eq.s32.totalorder %v318, 1
    %v321 = vsel %vm319, %v300, 0.0
    %v322 = vsel %vm320, %v301, 0.0
    %v323 = vsel %vm319, %v302, 0.0
    %v324 = vsel %vm320, %v303, 0.0
    %v325 = vsel %vm319, %v304, 0.0
    %v326 = vsel %vm320, %v305, 0.0
    %v327 = vsel %vm319, %v306, 0.0
    %v328 = vsel %vm320, %v307, 0.0
    %337 = vrot.lane.b32.xlu0 %v321, 1
    %v338 = vpop.permute.xlu0 %337
    %339 = vrot.lane.b32.xlu0 %v322, 1
    %v340 = vpop.permute.xlu0 %339
    %341 = vrot.lane.b32.xlu0 %v323, 1
    %v342 = vpop.permute.xlu0 %341
    %343 = vrot.lane.b32.xlu0 %v324, 1
    %v344 = vpop.permute.xlu0 %343
    %345 = vrot.lane.b32.xlu0 %v325, 1
    %v346 = vpop.permute.xlu0 %345
    %347 = vrot.lane.b32.xlu0 %v326, 1
    %v348 = vpop.permute.xlu0 %347
    %349 = vrot.lane.b32.xlu0 %v327, 1
    %v350 = vpop.permute.xlu0 %349
    %351 = vrot.lane.b32.xlu0 %v328, 1
    %v352 = vpop.permute.xlu0 %351
    %vm353 = vcmask 7168
    %v354 = vsel %vm353, %v338, %v340
    %v355 = vsel %vm353, %v342, %v344
    %v356 = vsel %vm353, %v346, %v348
    %v357 = vsel %vm353, %v350, %v352
    %vm366 = vcmask 1047560
    %367 = vst.msk [vmem:[#allocation3] sm:$0xff] %vm366, %v338
    %vm368 = vcmask 613376
    %369 = vst.msk [vmem:[#allocation3 + $0x8] sm:$0xff] %vm368, %v354
    %370 = vst.msk [vmem:[#allocation3 + $0x10] sm:$0xff] %vm366, %v342
    %371 = vst.msk [vmem:[#allocation3 + $0x18] sm:$0xff] %vm368, %v355
    %372 = vst.msk [vmem:[#allocation3 + $0x20] sm:$0xff] %vm366, %v346
    %373 = vst.msk [vmem:[#allocation3 + $0x28] sm:$0xff] %vm368, %v356
    %374 = vst.msk [vmem:[#allocation3 + $0x30] sm:$0xff] %vm366, %v350
    %375 = vst.msk [vmem:[#allocation3 + $0x38] sm:$0xff] %vm368, %v357
    %v376 = vld [vmem:[#allocation3] sm:$0xff]
    %v377 = vld [vmem:[#allocation3 + $0x8] sm:$0xff]
    %v378 = vld [vmem:[#allocation3 + $0x10] sm:$0xff]
    %v379 = vld [vmem:[#allocation3 + $0x18] sm:$0xff]
    %v380 = vld [vmem:[#allocation3 + $0x20] sm:$0xff]
    %v381 = vld [vmem:[#allocation3 + $0x28] sm:$0xff]
    %v382 = vld [vmem:[#allocation3 + $0x30] sm:$0xff]
    %v383 = vld [vmem:[#allocation3 + $0x38] sm:$0xff]
    %392 = vrot.lane.b32.xlu0 %v376, 127
    %v393 = vpop.permute.xlu0 %392
    %394 = vrot.lane.b32.xlu0 %v377, 127
    %v395 = vpop.permute.xlu0 %394
    %396 = vrot.lane.b32.xlu0 %v378, 127
    %v397 = vpop.permute.xlu0 %396
    %398 = vrot.lane.b32.xlu0 %v379, 127
    %v399 = vpop.permute.xlu0 %398
    %400 = vrot.lane.b32.xlu0 %v380, 127
    %v401 = vpop.permute.xlu0 %400
    %402 = vrot.lane.b32.xlu0 %v381, 127
    %v403 = vpop.permute.xlu0 %402
    %404 = vrot.lane.b32.xlu0 %v382, 127
    %v405 = vpop.permute.xlu0 %404
    %406 = vrot.lane.b32.xlu0 %v383, 127
    %v407 = vpop.permute.xlu0 %406
    %v408 = vsel %vm114, %v393, %v395
    %v409 = vsel %vm114, %v397, %v399
    %v410 = vsel %vm114, %v401, %v403
    %v411 = vsel %vm114, %v405, %v407
    %420 = vrot.lane.b32.xlu0 %v376, 126
    %v421 = vpop.permute.xlu0 %420
    %422 = vrot.lane.b32.xlu0 %v377, 126
    %v423 = vpop.permute.xlu0 %422
    %424 = vrot.lane.b32.xlu0 %v378, 126
    %v425 = vpop.permute.xlu0 %424
    %426 = vrot.lane.b32.xlu0 %v379, 126
    %v427 = vpop.permute.xlu0 %426
    %428 = vrot.lane.b32.xlu0 %v380, 126
    %v429 = vpop.permute.xlu0 %428
    %430 = vrot.lane.b32.xlu0 %v381, 126
    %v431 = vpop.permute.xlu0 %430
    %432 = vrot.lane.b32.xlu0 %v382, 126
    %v433 = vpop.permute.xlu0 %432
    %434 = vrot.lane.b32.xlu0 %v383, 126
    %v435 = vpop.permute.xlu0 %434
    %v436 = vsel %vm122, %v421, %v423
    %v437 = vsel %vm122, %v425, %v427
    %v438 = vsel %vm122, %v429, %v431
    %v439 = vsel %vm122, %v433, %v435
    %v448 = vld [vmem:[%s4] sm:$0xff]
    %v449 = vld [vmem:[%s4 + $0x8] sm:$0xff]
    %v450 = vld [vmem:[%s4 + $0x10] sm:$0xff]
    %v451 = vld [vmem:[%s4 + $0x18] sm:$0xff]
    %vm452 = vcmask 785408
    %v454 = vsel %vm452, %v448, 0
    %v457 = vsel %vm452, %v449, 0
    %v460 = vsel %vm452, %v450, 0
    %v463 = vsel %vm452, %v451, 0
    %465 = vmatprep.subr.mxu0 %v377
    %466 = vmatpush1.msra.mxu0 %v376
    %467 = vmatprep.subr.mxu0 %v379
    %468 = vmatpush1.msra.mxu0 %v378
    %469 = vmatprep.subr.mxu0 %v381
    %470 = vmatpush1.msra.mxu0 %v380
    %471 = vmatprep.subr.mxu0 %v383
    %472 = vmatpush1.msra.mxu0 %v382
    %473 = vmatprep.subr.mxu0 %v395
    %474 = vmatpush1.msra.mxu0 %v408
    %475 = vmatprep.subr.mxu0 %v399
    %476 = vmatpush1.msra.mxu0 %v409
    %477 = vmatprep.subr.mxu0 %v403
    %478 = vmatpush1.msra.mxu0 %v410
    %479 = vmatprep.subr.mxu0 %v407
    %480 = vmatpush1.msra.mxu0 %v411
    %481 = vmatprep.subr.mxu0 %v423
    %482 = vmatpush1.msra.mxu0 %v436
    %483 = vmatprep.subr.mxu0 %v427
    %484 = vmatpush1.msra.mxu0 %v437
    %485 = vmatprep.subr.mxu0 %v431
    %486 = vmatpush1.msra.mxu0 %v438
    %487 = vmatprep.subr.mxu0 %v435
    %488 = vmatpush1.msra.mxu0 %v439
    %489 = vmatprep.subr.mxu0 0.0
    %490 = vmatpush1.msra.mxu0 0.0
    %491 = vmatprep.subr.mxu0 0.0
    %492 = vmatpush1.msra.mxu0 0.0
    %493 = vmatprep.subr.mxu0 0.0
    %494 = vmatpush1.msra.mxu0 0.0
    %495 = vmatprep.subr.mxu0 0.0
    %496 = vmatpush1.msra.mxu0 0.0
    %497 = vmatprep.subr.mxu0 0.0
    %498 = vmatpush1.msra.mxu0 0.0
    %499 = vmatprep.subr.mxu0 0.0
    %500 = vmatpush1.msra.mxu0 0.0
    %501 = vmatprep.subr.mxu0 0.0
    %502 = vmatpush1.msra.mxu0 0.0
    %503 = vmatprep.subr.mxu0 0.0
    %504 = vmatpush1.msra.mxu0 0.0
    %505 = vmatprep.subr.mxu0 0.0
    %506 = vmatpush1.msra.mxu0 0.0
    %507 = vmatprep.subr.mxu0 0.0
    %508 = vmatpush1.msra.mxu0 0.0
    %509 = vmatprep.subr.mxu0 0.0
    %510 = vmatpush1.msra.mxu0 0.0
    %511 = vmatprep.subr.mxu0 0.0
    %512 = vmatpush1.msra.mxu0 0.0
    %513 = vmatprep.subr.mxu0 0.0
    %514 = vmatpush1.msra.mxu0 0.0
    %515 = vmatprep.subr.mxu0 0.0
    %516 = vmatpush1.msra.mxu0 0.0
    %517 = vmatprep.subr.mxu0 0.0
    %518 = vmatpush1.msra.mxu0 0.0
    %519 = vmatprep.subr.mxu0 0.0
    %520 = vmatpush1.msra.mxu0 0.0
    %521 = vmatprep.subr.mxu0 0.0
    %522 = vmatpush1.msra.mxu0 0.0
    %523 = vmatprep.subr.mxu0 0.0
    %524 = vmatpush1.msra.mxu0 0.0
    %525 = vmatprep.subr.mxu0 0.0
    %526 = vmatpush1.msra.mxu0 0.0
    %527 = vmatprep.subr.mxu0 0.0
    %528 = vmatpush1.msra.mxu0 0.0
    %529 = vmatprep.mubr.f32.mxu0 0.0
    %530 = vmatmul.mubr.f32.gmra.mrb[0].mxu0 %v454
    %v531 = vpop.f32.mrb[0].mxu0
    %v532 = vadd.f32 0.0, %v531
    %v533 = vpop.f32.mrb[0].mxu0
    %v534 = vadd.f32 0.0, %v533
    %535 = vmatprep.mubr.f32.mxu0 0.0
    %536 = vmatmul.mubr.f32.gmra.mrb[0].mxu0 %v457
    %v537 = vpop.f32.mrb[0].mxu0
    %v538 = vadd.f32 0.0, %v537
    %v539 = vpop.f32.mrb[0].mxu0
    %v540 = vadd.f32 0.0, %v539
    %541 = vmatprep.mubr.f32.mxu0 0.0
    %542 = vmatmul.mubr.f32.gmra.mrb[0].mxu0 %v460
    %v543 = vpop.f32.mrb[0].mxu0
    %v544 = vadd.f32 0.0, %v543
    %v545 = vpop.f32.mrb[0].mxu0
    %v546 = vadd.f32 0.0, %v545
    %547 = vmatprep.mubr.f32.mxu0 0.0
    %548 = vmatmul.mubr.f32.gmra.mrb[0].mxu0 %v463
    %v549 = vpop.f32.mrb[0].mxu0
    %v550 = vadd.f32 0.0, %v549
    %v551 = vpop.f32.mrb[0].mxu0
    %v552 = vadd.f32 0.0, %v551
    %553 = vdwg.mxu0
    %v554 = vld [vmem:[%s5] sm:$0xff]
    %v555 = vld [vmem:[%s5 + $0x8] sm:$0xff]
    %v556 = vld [vmem:[%s5 + $0x10] sm:$0xff]
    %v557 = vld [vmem:[%s5 + $0x18] sm:$0xff]
    %559 = vset.pattern.permute.xlu0 0
    %560 = vperm.xlu0 %559, %v554
    %v561 = vpop.permute.xlu0 %560
    %564 = vset.pattern.permute.xlu0 0
    %565 = vperm.xlu0 %564, %v555
    %v566 = vpop.permute.xlu0 %565
    %569 = vset.pattern.permute.xlu0 0
    %570 = vperm.xlu0 %569, %v556
    %v571 = vpop.permute.xlu0 %570
    %574 = vset.pattern.permute.xlu0 0
    %575 = vperm.xlu0 %574, %v557
    %v576 = vpop.permute.xlu0 %575
    %v578 = vmul.f32 %v532, %v561
    %v579 = vmul.f32 %v534, %v561
    %v580 = vmul.f32 %v538, %v566
    %v581 = vmul.f32 %v540, %v566
    %v582 = vmul.f32 %v544, %v571
    %v583 = vmul.f32 %v546, %v571
    %v584 = vmul.f32 %v550, %v576
    %v585 = vmul.f32 %v552, %v576
    %v586 = vld [vmem:[%s6] sm:$0xff]
    %v587 = vld [vmem:[%s6 + $0x8] sm:$0xff]
    %v588 = vld [vmem:[%s6 + $0x10] sm:$0xff]
    %v589 = vld [vmem:[%s6 + $0x18] sm:$0xff]
    %591 = vset.pattern.permute.xlu0 0
    %592 = vperm.xlu0 %591, %v586
    %v593 = vpop.permute.xlu0 %592
    %596 = vset.pattern.permute.xlu0 0
    %597 = vperm.xlu0 %596, %v587
    %v598 = vpop.permute.xlu0 %597
    %601 = vset.pattern.permute.xlu0 0
    %602 = vperm.xlu0 %601, %v588
    %v603 = vpop.permute.xlu0 %602
    %606 = vset.pattern.permute.xlu0 0
    %607 = vperm.xlu0 %606, %v589
    %v608 = vpop.permute.xlu0 %607
    %v610 = vadd.f32 %v578, %v593
    %v611 = vadd.f32 %v579, %v593
    %v612 = vadd.f32 %v580, %v598
    %v613 = vadd.f32 %v581, %v598
    %v614 = vadd.f32 %v582, %v603
    %v615 = vadd.f32 %v583, %v603
    %v616 = vadd.f32 %v584, %v608
    %v617 = vadd.f32 %v585, %v608
    %v618 = vmax.f32 %v610, 0.0
    %v619 = vmax.f32 %v611, 0.0
    %v620 = vmax.f32 %v612, 0.0
    %v621 = vmax.f32 %v613, 0.0
    %v622 = vmax.f32 %v614, 0.0
    %v623 = vmax.f32 %v615, 0.0
    %v624 = vmax.f32 %v616, 0.0
    %v625 = vmax.f32 %v617, 0.0
    %626 = vst [vmem:[#allocation4] sm:$0xff] 0.0
    %627 = vst.msk [vmem:[#allocation4 + $0x8] sm:$0xff] %vm309, 0.0
    %628 = vst [vmem:[#allocation4 + $0x10] sm:$0xff] 0.0
    %629 = vst.msk [vmem:[#allocation4 + $0x18] sm:$0xff] %vm309, 0.0
    %630 = vst [vmem:[#allocation4 + $0x20] sm:$0xff] 0.0
    %631 = vst.msk [vmem:[#allocation4 + $0x28] sm:$0xff] %vm309, 0.0
    %632 = vst [vmem:[#allocation4 + $0x30] sm:$0xff] 0.0
    %633 = vst.msk [vmem:[#allocation4 + $0x38] sm:$0xff] %vm309, 0.0
    %v634 = vsel %vm319, %v618, 0.0
    %v635 = vsel %vm320, %v619, 0.0
    %v636 = vsel %vm319, %v620, 0.0
    %v637 = vsel %vm320, %v621, 0.0
    %v638 = vsel %vm319, %v622, 0.0
    %v639 = vsel %vm320, %v623, 0.0
    %v640 = vsel %vm319, %v624, 0.0
    %v641 = vsel %vm320, %v625, 0.0
    %650 = vrot.lane.b32.xlu0 %v634, 1
    %v651 = vpop.permute.xlu0 %650
    %652 = vrot.lane.b32.xlu0 %v635, 1
    %v653 = vpop.permute.xlu0 %652
    %654 = vrot.lane.b32.xlu0 %v636, 1
    %v655 = vpop.permute.xlu0 %654
    %656 = vrot.lane.b32.xlu0 %v637, 1
    %v657 = vpop.permute.xlu0 %656
    %658 = vrot.lane.b32.xlu0 %v638, 1
    %v659 = vpop.permute.xlu0 %658
    %660 = vrot.lane.b32.xlu0 %v639, 1
    %v661 = vpop.permute.xlu0 %660
    %662 = vrot.lane.b32.xlu0 %v640, 1
    %v663 = vpop.permute.xlu0 %662
    %664 = vrot.lane.b32.xlu0 %v641, 1
    %v665 = vpop.permute.xlu0 %664
    %v666 = vsel %vm353, %v651, %v653
    %v667 = vsel %vm353, %v655, %v657
    %v668 = vsel %vm353, %v659, %v661
    %v669 = vsel %vm353, %v663, %v665
    %678 = vst.msk [vmem:[#allocation4] sm:$0xff] %vm366, %v651
    %679 = vst.msk [vmem:[#allocation4 + $0x8] sm:$0xff] %vm368, %v666
    %680 = vst.msk [vmem:[#allocation4 + $0x10] sm:$0xff] %vm366, %v655
    %681 = vst.msk [vmem:[#allocation4 + $0x18] sm:$0xff] %vm368, %v667
    %682 = vst.msk [vmem:[#allocation4 + $0x20] sm:$0xff] %vm366, %v659
    %683 = vst.msk [vmem:[#allocation4 + $0x28] sm:$0xff] %vm368, %v668
    %684 = vst.msk [vmem:[#allocation4 + $0x30] sm:$0xff] %vm366, %v663
    %685 = vst.msk [vmem:[#allocation4 + $0x38] sm:$0xff] %vm368, %v669
    %v686 = vld [vmem:[#allocation4] sm:$0xff]
    %v687 = vld [vmem:[#allocation4 + $0x8] sm:$0xff]
    %v688 = vld [vmem:[#allocation4 + $0x10] sm:$0xff]
    %v689 = vld [vmem:[#allocation4 + $0x18] sm:$0xff]
    %v690 = vld [vmem:[#allocation4 + $0x20] sm:$0xff]
    %v691 = vld [vmem:[#allocation4 + $0x28] sm:$0xff]
    %v692 = vld [vmem:[#allocation4 + $0x30] sm:$0xff]
    %v693 = vld [vmem:[#allocation4 + $0x38] sm:$0xff]
    %702 = vrot.lane.b32.xlu0 %v686, 127
    %v703 = vpop.permute.xlu0 %702
    %704 = vrot.lane.b32.xlu0 %v687, 127
    %v705 = vpop.permute.xlu0 %704
    %706 = vrot.lane.b32.xlu0 %v688, 127
    %v707 = vpop.permute.xlu0 %706
    %708 = vrot.lane.b32.xlu0 %v689, 127
    %v709 = vpop.permute.xlu0 %708
    %710 = vrot.lane.b32.xlu0 %v690, 127
    %v711 = vpop.permute.xlu0 %710
    %712 = vrot.lane.b32.xlu0 %v691, 127
    %v713 = vpop.permute.xlu0 %712
    %714 = vrot.lane.b32.xlu0 %v692, 127
    %v715 = vpop.permute.xlu0 %714
    %716 = vrot.lane.b32.xlu0 %v693, 127
    %v717 = vpop.permute.xlu0 %716
    %v718 = vsel %vm114, %v703, %v705
    %v719 = vsel %vm114, %v707, %v709
    %v720 = vsel %vm114, %v711, %v713
    %v721 = vsel %vm114, %v715, %v717
    %730 = vrot.lane.b32.xlu0 %v686, 126
    %v731 = vpop.permute.xlu0 %730
    %732 = vrot.lane.b32.xlu0 %v687, 126
    %v733 = vpop.permute.xlu0 %732
    %734 = vrot.lane.b32.xlu0 %v688, 126
    %v735 = vpop.permute.xlu0 %734
    %736 = vrot.lane.b32.xlu0 %v689, 126
    %v737 = vpop.permute.xlu0 %736
    %738 = vrot.lane.b32.xlu0 %v690, 126
    %v739 = vpop.permute.xlu0 %738
    %740 = vrot.lane.b32.xlu0 %v691, 126
    %v741 = vpop.permute.xlu0 %740
    %742 = vrot.lane.b32.xlu0 %v692, 126
    %v743 = vpop.permute.xlu0 %742
    %744 = vrot.lane.b32.xlu0 %v693, 126
    %v745 = vpop.permute.xlu0 %744
    %v746 = vsel %vm122, %v731, %v733
    %v747 = vsel %vm122, %v735, %v737
    %v748 = vsel %vm122, %v739, %v741
    %v749 = vsel %vm122, %v743, %v745
    %v758 = vld [vmem:[%s7] sm:$0xff]
    %v759 = vld [vmem:[%s7 + $0x8] sm:$0xff]
    %v760 = vld [vmem:[%s7 + $0x10] sm:$0xff]
    %v761 = vld [vmem:[%s7 + $0x18] sm:$0xff]
    %v763 = vsel %vm452, %v758, 0
    %v766 = vsel %vm452, %v759, 0
    %v769 = vsel %vm452, %v760, 0
    %v772 = vsel %vm452, %v761, 0
    %774 = vmatprep.subr.mxu0 %v687
    %775 = vmatpush1.msra.mxu0 %v686
    %776 = vmatprep.subr.mxu0 %v689
    %777 = vmatpush1.msra.mxu0 %v688
    %778 = vmatprep.subr.mxu0 %v691
    %779 = vmatpush1.msra.mxu0 %v690
    %780 = vmatprep.subr.mxu0 %v693
    %781 = vmatpush1.msra.mxu0 %v692
    %782 = vmatprep.subr.mxu0 %v705
    %783 = vmatpush1.msra.mxu0 %v718
    %784 = vmatprep.subr.mxu0 %v709
    %785 = vmatpush1.msra.mxu0 %v719
    %786 = vmatprep.subr.mxu0 %v713
    %787 = vmatpush1.msra.mxu0 %v720
    %788 = vmatprep.subr.mxu0 %v717
    %789 = vmatpush1.msra.mxu0 %v721
    %790 = vmatprep.subr.mxu0 %v733
    %791 = vmatpush1.msra.mxu0 %v746
    %792 = vmatprep.subr.mxu0 %v737
    %793 = vmatpush1.msra.mxu0 %v747
    %794 = vmatprep.subr.mxu0 %v741
    %795 = vmatpush1.msra.mxu0 %v748
    %796 = vmatprep.subr.mxu0 %v745
    %797 = vmatpush1.msra.mxu0 %v749
    %798 = vmatprep.subr.mxu0 0.0
    %799 = vmatpush1.msra.mxu0 0.0
    %800 = vmatprep.subr.mxu0 0.0
    %801 = vmatpush1.msra.mxu0 0.0
    %802 = vmatprep.subr.mxu0 0.0
    %803 = vmatpush1.msra.mxu0 0.0
    %804 = vmatprep.subr.mxu0 0.0
    %805 = vmatpush1.msra.mxu0 0.0
    %806 = vmatprep.subr.mxu0 0.0
    %807 = vmatpush1.msra.mxu0 0.0
    %808 = vmatprep.subr.mxu0 0.0
    %809 = vmatpush1.msra.mxu0 0.0
    %810 = vmatprep.subr.mxu0 0.0
    %811 = vmatpush1.msra.mxu0 0.0
    %812 = vmatprep.subr.mxu0 0.0
    %813 = vmatpush1.msra.mxu0 0.0
    %814 = vmatprep.subr.mxu0 0.0
    %815 = vmatpush1.msra.mxu0 0.0
    %816 = vmatprep.subr.mxu0 0.0
    %817 = vmatpush1.msra.mxu0 0.0
    %818 = vmatprep.subr.mxu0 0.0
    %819 = vmatpush1.msra.mxu0 0.0
    %820 = vmatprep.subr.mxu0 0.0
    %821 = vmatpush1.msra.mxu0 0.0
    %822 = vmatprep.subr.mxu0 0.0
    %823 = vmatpush1.msra.mxu0 0.0
    %824 = vmatprep.subr.mxu0 0.0
    %825 = vmatpush1.msra.mxu0 0.0
    %826 = vmatprep.subr.mxu0 0.0
    %827 = vmatpush1.msra.mxu0 0.0
    %828 = vmatprep.subr.mxu0 0.0
    %829 = vmatpush1.msra.mxu0 0.0
    %830 = vmatprep.subr.mxu0 0.0
    %831 = vmatpush1.msra.mxu0 0.0
    %832 = vmatprep.subr.mxu0 0.0
    %833 = vmatpush1.msra.mxu0 0.0
    %834 = vmatprep.subr.mxu0 0.0
    %835 = vmatpush1.msra.mxu0 0.0
    %836 = vmatprep.subr.mxu0 0.0
    %837 = vmatpush1.msra.mxu0 0.0
    %838 = vmatprep.mubr.f32.mxu0 0.0
    %839 = vmatmul.mubr.f32.gmra.mrb[0].mxu0 %v763
    %v840 = vpop.f32.mrb[0].mxu0
    %v841 = vadd.f32 0.0, %v840
    %v842 = vpop.f32.mrb[0].mxu0
    %v843 = vadd.f32 0.0, %v842
    %844 = vmatprep.mubr.f32.mxu0 0.0
    %845 = vmatmul.mubr.f32.gmra.mrb[0].mxu0 %v766
    %v846 = vpop.f32.mrb[0].mxu0
    %v847 = vadd.f32 0.0, %v846
    %v848 = vpop.f32.mrb[0].mxu0
    %v849 = vadd.f32 0.0, %v848
    %850 = vmatprep.mubr.f32.mxu0 0.0
    %851 = vmatmul.mubr.f32.gmra.mrb[0].mxu0 %v769
    %v852 = vpop.f32.mrb[0].mxu0
    %v853 = vadd.f32 0.0, %v852
    %v854 = vpop.f32.mrb[0].mxu0
    %v855 = vadd.f32 0.0, %v854
    %856 = vmatprep.mubr.f32.mxu0 0.0
    %857 = vmatmul.mubr.f32.gmra.mrb[0].mxu0 %v772
    %v858 = vpop.f32.mrb[0].mxu0
    %v859 = vadd.f32 0.0, %v858
    %v860 = vpop.f32.mrb[0].mxu0
    %v861 = vadd.f32 0.0, %v860
    %862 = vdwg.mxu0
    %v863 = vld [vmem:[%s8] sm:$0xff]
    %v864 = vld [vmem:[%s8 + $0x8] sm:$0xff]
    %v865 = vld [vmem:[%s8 + $0x10] sm:$0xff]
    %v866 = vld [vmem:[%s8 + $0x18] sm:$0xff]
    %868 = vset.pattern.permute.xlu0 0
    %869 = vperm.xlu0 %868, %v863
    %v870 = vpop.permute.xlu0 %869
    %873 = vset.pattern.permute.xlu0 0
    %874 = vperm.xlu0 %873, %v864
    %v875 = vpop.permute.xlu0 %874
    %878 = vset.pattern.permute.xlu0 0
    %879 = vperm.xlu0 %878, %v865
    %v880 = vpop.permute.xlu0 %879
    %883 = vset.pattern.permute.xlu0 0
    %884 = vperm.xlu0 %883, %v866
    %v885 = vpop.permute.xlu0 %884
    %v887 = vmul.f32 %v841, %v870
    %v888 = vmul.f32 %v843, %v870
    %v889 = vmul.f32 %v847, %v875
    %v890 = vmul.f32 %v849, %v875
    %v891 = vmul.f32 %v853, %v880
    %v892 = vmul.f32 %v855, %v880
    %v893 = vmul.f32 %v859, %v885
    %v894 = vmul.f32 %v861, %v885
    %v895 = vld [vmem:[%s9] sm:$0xff]
    %v896 = vld [vmem:[%s9 + $0x8] sm:$0xff]
    %v897 = vld [vmem:[%s9 + $0x10] sm:$0xff]
    %v898 = vld [vmem:[%s9 + $0x18] sm:$0xff]
    %900 = vset.pattern.permute.xlu0 0
    %901 = vperm.xlu0 %900, %v895
    %v902 = vpop.permute.xlu0 %901
    %905 = vset.pattern.permute.xlu0 0
    %906 = vperm.xlu0 %905, %v896
    %v907 = vpop.permute.xlu0 %906
    %910 = vset.pattern.permute.xlu0 0
    %911 = vperm.xlu0 %910, %v897
    %v912 = vpop.permute.xlu0 %911
    %915 = vset.pattern.permute.xlu0 0
    %916 = vperm.xlu0 %915, %v898
    %v917 = vpop.permute.xlu0 %916
    %v919 = vadd.f32 %v887, %v902
    %v920 = vadd.f32 %v888, %v902
    %v921 = vadd.f32 %v889, %v907
    %v922 = vadd.f32 %v890, %v907
    %v923 = vadd.f32 %v891, %v912
    %v924 = vadd.f32 %v892, %v912
    %v925 = vadd.f32 %v893, %v917
    %v926 = vadd.f32 %v894, %v917
    %v927 = vadd.f32 %v919, %v300
    %v928 = vadd.f32 %v920, %v301
    %v929 = vadd.f32 %v921, %v302
    %v930 = vadd.f32 %v922, %v303
    %v931 = vadd.f32 %v923, %v304
    %v932 = vadd.f32 %v924, %v305
    %v933 = vadd.f32 %v925, %v306
    %v934 = vadd.f32 %v926, %v307
    %v935 = vmax.f32 %v927, 0.0
    %v936 = vmax.f32 %v928, 0.0
    %v937 = vmax.f32 %v929, 0.0
    %v938 = vmax.f32 %v930, 0.0
    %v939 = vmax.f32 %v931, 0.0
    %v940 = vmax.f32 %v932, 0.0
    %v941 = vmax.f32 %v933, 0.0
    %v942 = vmax.f32 %v934, 0.0
    %943 = vst [vmem:[#allocation5] sm:$0xff] %v935
    %vm944 = vcmask 605184
    %945 = vst.msk [vmem:[#allocation5 + $0x8] sm:$0xff] %vm944, %v936
    %946 = vst [vmem:[#allocation5 + $0x10] sm:$0xff] %v937
    %947 = vst.msk [vmem:[#allocation5 + $0x18] sm:$0xff] %vm944, %v938
    %948 = vst [vmem:[#allocation5 + $0x20] sm:$0xff] %v939
    %949 = vst.msk [vmem:[#allocation5 + $0x28] sm:$0xff] %vm944, %v940
    %950 = vst [vmem:[#allocation5 + $0x30] sm:$0xff] %v941
    %951 = vst.msk [vmem:[#allocation5 + $0x38] sm:$0xff] %vm944, %v942
    %v952 = vld [vmem:[#allocation5] sm:$0xff]
    %v953 = vld [vmem:[#allocation5 + $0x10] sm:$0xff]
    %v954 = vld [vmem:[#allocation5 + $0x20] sm:$0xff]
    %v955 = vld [vmem:[#allocation5 + $0x30] sm:$0xff]
    %v956 = vld [vmem:[#allocation6] sm:$0xff]
    %v957 = vld [vmem:[#allocation6 + $0x8] sm:$0xff]
    %v958 = vld [vmem:[#allocation6 + $0x10] sm:$0xff]
    %v959 = vld [vmem:[#allocation6 + $0x18] sm:$0xff]
    %v960 = vmul.f32 %v952, %v956
    %v961 = vmul.f32 %v953, %v957
    %v962 = vmul.f32 %v954, %v958
    %v963 = vmul.f32 %v955, %v959
    %vm964 = vcmask 818176
    %v965 = vsel %vm964, %v960, 0.0
    %966 = vadd.xlane.f32.xlu0 %v965
    %v967 = vpop.xlane.xlu0 %966
    %v968 = vsel %vm964, %v961, 0.0
    %969 = vadd.xlane.f32.xlu0 %v968
    %v970 = vpop.xlane.xlu0 %969
    %v971 = vsel %vm964, %v962, 0.0
    %972 = vadd.xlane.f32.xlu0 %v971
    %v973 = vpop.xlane.xlu0 %972
    %v974 = vsel %vm964, %v963, 0.0
    %975 = vadd.xlane.f32.xlu0 %v974
    %v976 = vpop.xlane.xlu0 %975
    %v977 = vadd.f32 %v967, %v970
    %v978 = vadd.f32 %v977, %v973
    %v979 = vadd.f32 %v978, %v976
    %v980 = vrot.slane %v979, 4
    %v981 = vadd.f32 %v979, %v980
    %v982 = vrot.slane %v981, 2
    %v983 = vadd.f32 %v981, %v982
    %v984 = vrot.slane %v983, 1
    %v985 = vadd.f32 %v983, %v984
    %v986 = vld [vmem:[%s11] sm:$0x1]
    %v987 = vadd.f32 %v985, %v986
    %s988 = scalar_lea.vmem [#allocation6], 32
    %v989 = vld [vmem:[%s988] sm:$0xff]
    %v990 = vld [vmem:[%s988 + $0x8] sm:$0xff]
    %v991 = vld [vmem:[%s988 + $0x10] sm:$0xff]
    %v992 = vld [vmem:[%s988 + $0x18] sm:$0xff]
    %v993 = vmul.f32 %v952, %v989
    %v994 = vmul.f32 %v953, %v990
    %v995 = vmul.f32 %v954, %v991
    %v996 = vmul.f32 %v955, %v992
    %v997 = vsel %vm964, %v993, 0.0
    %998 = vadd.xlane.f32.xlu0 %v997
    %v999 = vpop.xlane.xlu0 %998
    %v1000 = vsel %vm964, %v994, 0.0
    %1001 = vadd.xlane.f32.xlu0 %v1000
    %v1002 = vpop.xlane.xlu0 %1001
    %v1003 = vsel %vm964, %v995, 0.0
    %1004 = vadd.xlane.f32.xlu0 %v1003
    %v1005 = vpop.xlane.xlu0 %1004
    %v1006 = vsel %vm964, %v996, 0.0
    %1007 = vadd.xlane.f32.xlu0 %v1006
    %v1008 = vpop.xlane.xlu0 %1007
    %v1009 = vadd.f32 %v999, %v1002
    %v1010 = vadd.f32 %v1009, %v1005
    %v1011 = vadd.f32 %v1010, %v1008
    %v1012 = vrot.slane %v1011, 4
    %v1013 = vadd.f32 %v1011, %v1012
    %v1014 = vrot.slane %v1013, 2
    %v1015 = vadd.f32 %v1013, %v1014
    %v1016 = vrot.slane %v1015, 1
    %v1017 = vadd.f32 %v1015, %v1016
    %s1018 = scalar_lea.vmem [#allocation6], 64
    %v1019 = vld [vmem:[%s1018] sm:$0xff]
    %v1020 = vld [vmem:[%s1018 + $0x8] sm:$0xff]
    %v1021 = vld [vmem:[%s1018 + $0x10] sm:$0xff]
    %v1022 = vld [vmem:[%s1018 + $0x18] sm:$0xff]
    %v1023 = vmul.f32 %v952, %v1019
    %v1024 = vmul.f32 %v953, %v1020
    %v1025 = vmul.f32 %v954, %v1021
    %v1026 = vmul.f32 %v955, %v1022
    %v1027 = vsel %vm964, %v1023, 0.0
    %1028 = vadd.xlane.f32.xlu0 %v1027
    %v1029 = vpop.xlane.xlu0 %1028
    %v1030 = vsel %vm964, %v1024, 0.0
    %1031 = vadd.xlane.f32.xlu0 %v1030
    %v1032 = vpop.xlane.xlu0 %1031
    %v1033 = vsel %vm964, %v1025, 0.0
    %1034 = vadd.xlane.f32.xlu0 %v1033
    %v1035 = vpop.xlane.xlu0 %1034
    %v1036 = vsel %vm964, %v1026, 0.0
    %1037 = vadd.xlane.f32.xlu0 %v1036
    %v1038 = vpop.xlane.xlu0 %1037
    %v1039 = vadd.f32 %v1029, %v1032
    %v1040 = vadd.f32 %v1039, %v1035
    %v1041 = vadd.f32 %v1040, %v1038
    %v1042 = vrot.slane %v1041, 4
    %v1043 = vadd.f32 %v1041, %v1042
    %v1044 = vrot.slane %v1043, 2
    %v1045 = vadd.f32 %v1043, %v1044
    %v1046 = vrot.slane %v1045, 1
    %v1047 = vadd.f32 %v1045, %v1046
    %s1048 = scalar_lea.vmem [#allocation6], 96
    %v1049 = vld [vmem:[%s1048] sm:$0xff]
    %v1050 = vld [vmem:[%s1048 + $0x8] sm:$0xff]
    %v1051 = vld [vmem:[%s1048 + $0x10] sm:$0xff]
    %v1052 = vld [vmem:[%s1048 + $0x18] sm:$0xff]
    %v1053 = vmul.f32 %v952, %v1049
    %v1054 = vmul.f32 %v953, %v1050
    %v1055 = vmul.f32 %v954, %v1051
    %v1056 = vmul.f32 %v955, %v1052
    %v1057 = vsel %vm964, %v1053, 0.0
    %1058 = vadd.xlane.f32.xlu0 %v1057
    %v1059 = vpop.xlane.xlu0 %1058
    %v1060 = vsel %vm964, %v1054, 0.0
    %1061 = vadd.xlane.f32.xlu0 %v1060
    %v1062 = vpop.xlane.xlu0 %1061
    %v1063 = vsel %vm964, %v1055, 0.0
    %1064 = vadd.xlane.f32.xlu0 %v1063
    %v1065 = vpop.xlane.xlu0 %1064
    %v1066 = vsel %vm964, %v1056, 0.0
    %1067 = vadd.xlane.f32.xlu0 %v1066
    %v1068 = vpop.xlane.xlu0 %1067
    %v1069 = vadd.f32 %v1059, %v1062
    %v1070 = vadd.f32 %v1069, %v1065
    %v1071 = vadd.f32 %v1070, %v1068
    %v1072 = vrot.slane %v1071, 4
    %v1073 = vadd.f32 %v1071, %v1072
    %v1074 = vrot.slane %v1073, 2
    %v1075 = vadd.f32 %v1073, %v1074
    %v1076 = vrot.slane %v1075, 1
    %v1077 = vadd.f32 %v1075, %v1076
    %s1078 = scalar_lea.vmem [#allocation6], 128
    %v1079 = vld [vmem:[%s1078] sm:$0xff]
    %v1080 = vld [vmem:[%s1078 + $0x8] sm:$0xff]
    %v1081 = vld [vmem:[%s1078 + $0x10] sm:$0xff]
    %v1082 = vld [vmem:[%s1078 + $0x18] sm:$0xff]
    %v1083 = vmul.f32 %v952, %v1079
    %v1084 = vmul.f32 %v953, %v1080
    %v1085 = vmul.f32 %v954, %v1081
    %v1086 = vmul.f32 %v955, %v1082
    %v1087 = vsel %vm964, %v1083, 0.0
    %1088 = vadd.xlane.f32.xlu0 %v1087
    %v1089 = vpop.xlane.xlu0 %1088
    %v1090 = vsel %vm964, %v1084, 0.0
    %1091 = vadd.xlane.f32.xlu0 %v1090
    %v1092 = vpop.xlane.xlu0 %1091
    %v1093 = vsel %vm964, %v1085, 0.0
    %1094 = vadd.xlane.f32.xlu0 %v1093
    %v1095 = vpop.xlane.xlu0 %1094
    %v1096 = vsel %vm964, %v1086, 0.0
    %1097 = vadd.xlane.f32.xlu0 %v1096
    %v1098 = vpop.xlane.xlu0 %1097
    %v1099 = vadd.f32 %v1089, %v1092
    %v1100 = vadd.f32 %v1099, %v1095
    %v1101 = vadd.f32 %v1100, %v1098
    %v1102 = vrot.slane %v1101, 4
    %v1103 = vadd.f32 %v1101, %v1102
    %v1104 = vrot.slane %v1103, 2
    %v1105 = vadd.f32 %v1103, %v1104
    %v1106 = vrot.slane %v1105, 1
    %v1107 = vadd.f32 %v1105, %v1106
    %s1108 = scalar_lea.vmem [#allocation6], 160
    %v1109 = vld [vmem:[%s1108] sm:$0xff]
    %v1110 = vld [vmem:[%s1108 + $0x8] sm:$0xff]
    %v1111 = vld [vmem:[%s1108 + $0x10] sm:$0xff]
    %v1112 = vld [vmem:[%s1108 + $0x18] sm:$0xff]
    %v1113 = vmul.f32 %v952, %v1109
    %v1114 = vmul.f32 %v953, %v1110
    %v1115 = vmul.f32 %v954, %v1111
    %v1116 = vmul.f32 %v955, %v1112
    %v1117 = vsel %vm964, %v1113, 0.0
    %1118 = vadd.xlane.f32.xlu0 %v1117
    %v1119 = vpop.xlane.xlu0 %1118
    %v1120 = vsel %vm964, %v1114, 0.0
    %1121 = vadd.xlane.f32.xlu0 %v1120
    %v1122 = vpop.xlane.xlu0 %1121
    %v1123 = vsel %vm964, %v1115, 0.0
    %1124 = vadd.xlane.f32.xlu0 %v1123
    %v1125 = vpop.xlane.xlu0 %1124
    %v1126 = vsel %vm964, %v1116, 0.0
    %1127 = vadd.xlane.f32.xlu0 %v1126
    %v1128 = vpop.xlane.xlu0 %1127
    %v1129 = vadd.f32 %v1119, %v1122
    %v1130 = vadd.f32 %v1129, %v1125
    %v1131 = vadd.f32 %v1130, %v1128
    %v1132 = vrot.slane %v1131, 4
    %v1133 = vadd.f32 %v1131, %v1132
    %v1134 = vrot.slane %v1133, 2
    %v1135 = vadd.f32 %v1133, %v1134
    %v1136 = vrot.slane %v1135, 1
    %v1137 = vadd.f32 %v1135, %v1136
    %s1138 = scalar_lea.vmem [#allocation6], 192
    %v1139 = vld [vmem:[%s1138] sm:$0xff]
    %v1140 = vld [vmem:[%s1138 + $0x8] sm:$0xff]
    %v1141 = vld [vmem:[%s1138 + $0x10] sm:$0xff]
    %v1142 = vld [vmem:[%s1138 + $0x18] sm:$0xff]
    %v1143 = vmul.f32 %v952, %v1139
    %v1144 = vmul.f32 %v953, %v1140
    %v1145 = vmul.f32 %v954, %v1141
    %v1146 = vmul.f32 %v955, %v1142
    %v1147 = vsel %vm964, %v1143, 0.0
    %1148 = vadd.xlane.f32.xlu0 %v1147
    %v1149 = vpop.xlane.xlu0 %1148
    %v1150 = vsel %vm964, %v1144, 0.0
    %1151 = vadd.xlane.f32.xlu0 %v1150
    %v1152 = vpop.xlane.xlu0 %1151
    %v1153 = vsel %vm964, %v1145, 0.0
    %1154 = vadd.xlane.f32.xlu0 %v1153
    %v1155 = vpop.xlane.xlu0 %1154
    %v1156 = vsel %vm964, %v1146, 0.0
    %1157 = vadd.xlane.f32.xlu0 %v1156
    %v1158 = vpop.xlane.xlu0 %1157
    %v1159 = vadd.f32 %v1149, %v1152
    %v1160 = vadd.f32 %v1159, %v1155
    %v1161 = vadd.f32 %v1160, %v1158
    %v1162 = vrot.slane %v1161, 4
    %v1163 = vadd.f32 %v1161, %v1162
    %v1164 = vrot.slane %v1163, 2
    %v1165 = vadd.f32 %v1163, %v1164
    %v1166 = vrot.slane %v1165, 1
    %v1167 = vadd.f32 %v1165, %v1166
    %s1168 = scalar_lea.vmem [#allocation6], 224
    %v1169 = vld [vmem:[%s1168] sm:$0xff]
    %v1170 = vld [vmem:[%s1168 + $0x8] sm:$0xff]
    %v1171 = vld [vmem:[%s1168 + $0x10] sm:$0xff]
    %v1172 = vld [vmem:[%s1168 + $0x18] sm:$0xff]
    %v1173 = vmul.f32 %v952, %v1169
    %v1174 = vmul.f32 %v953, %v1170
    %v1175 = vmul.f32 %v954, %v1171
    %v1176 = vmul.f32 %v955, %v1172
    %v1177 = vsel %vm964, %v1173, 0.0
    %1178 = vadd.xlane.f32.xlu0 %v1177
    %v1179 = vpop.xlane.xlu0 %1178
    %v1180 = vsel %vm964, %v1174, 0.0
    %1181 = vadd.xlane.f32.xlu0 %v1180
    %v1182 = vpop.xlane.xlu0 %1181
    %v1183 = vsel %vm964, %v1175, 0.0
    %1184 = vadd.xlane.f32.xlu0 %v1183
    %v1185 = vpop.xlane.xlu0 %1184
    %v1186 = vsel %vm964, %v1176, 0.0
    %1187 = vadd.xlane.f32.xlu0 %v1186
    %v1188 = vpop.xlane.xlu0 %1187
    %v1189 = vadd.f32 %v1179, %v1182
    %v1190 = vadd.f32 %v1189, %v1185
    %v1191 = vadd.f32 %v1190, %v1188
    %v1192 = vrot.slane %v1191, 4
    %v1193 = vadd.f32 %v1191, %v1192
    %v1194 = vrot.slane %v1193, 2
    %v1195 = vadd.f32 %v1193, %v1194
    %v1196 = vrot.slane %v1195, 1
    %v1197 = vadd.f32 %v1195, %v1196
    %s1198 = scalar_lea.vmem [#allocation6], 256
    %v1199 = vld [vmem:[%s1198] sm:$0xff]
    %v1200 = vld [vmem:[%s1198 + $0x8] sm:$0xff]
    %v1201 = vld [vmem:[%s1198 + $0x10] sm:$0xff]
    %v1202 = vld [vmem:[%s1198 + $0x18] sm:$0xff]
    %v1203 = vmul.f32 %v952, %v1199
    %v1204 = vmul.f32 %v953, %v1200
    %v1205 = vmul.f32 %v954, %v1201
    %v1206 = vmul.f32 %v955, %v1202
    %v1207 = vsel %vm964, %v1203, 0.0
    %1208 = vadd.xlane.f32.xlu0 %v1207
    %v1209 = vpop.xlane.xlu0 %1208
    %v1210 = vsel %vm964, %v1204, 0.0
    %1211 = vadd.xlane.f32.xlu0 %v1210
    %v1212 = vpop.xlane.xlu0 %1211
    %v1213 = vsel %vm964, %v1205, 0.0
    %1214 = vadd.xlane.f32.xlu0 %v1213
    %v1215 = vpop.xlane.xlu0 %1214
    %v1216 = vsel %vm964, %v1206, 0.0
    %1217 = vadd.xlane.f32.xlu0 %v1216
    %v1218 = vpop.xlane.xlu0 %1217
    %v1219 = vadd.f32 %v1209, %v1212
    %v1220 = vadd.f32 %v1219, %v1215
    %v1221 = vadd.f32 %v1220, %v1218
    %v1222 = vrot.slane %v1221, 4
    %v1223 = vadd.f32 %v1221, %v1222
    %v1224 = vrot.slane %v1223, 2
    %v1225 = vadd.f32 %v1223, %v1224
    %v1226 = vrot.slane %v1225, 1
    %v1227 = vadd.f32 %v1225, %v1226
    %s1228 = scalar_lea.vmem [#allocation6], 288
    %v1229 = vld [vmem:[%s1228] sm:$0xff]
    %v1230 = vld [vmem:[%s1228 + $0x8] sm:$0xff]
    %v1231 = vld [vmem:[%s1228 + $0x10] sm:$0xff]
    %v1232 = vld [vmem:[%s1228 + $0x18] sm:$0xff]
    %v1233 = vmul.f32 %v952, %v1229
    %v1234 = vmul.f32 %v953, %v1230
    %v1235 = vmul.f32 %v954, %v1231
    %v1236 = vmul.f32 %v955, %v1232
    %v1237 = vsel %vm964, %v1233, 0.0
    %1238 = vadd.xlane.f32.xlu0 %v1237
    %v1239 = vpop.xlane.xlu0 %1238
    %v1240 = vsel %vm964, %v1234, 0.0
    %1241 = vadd.xlane.f32.xlu0 %v1240
    %v1242 = vpop.xlane.xlu0 %1241
    %v1243 = vsel %vm964, %v1235, 0.0
    %1244 = vadd.xlane.f32.xlu0 %v1243
    %v1245 = vpop.xlane.xlu0 %1244
    %v1246 = vsel %vm964, %v1236, 0.0
    %1247 = vadd.xlane.f32.xlu0 %v1246
    %v1248 = vpop.xlane.xlu0 %1247
    %v1249 = vadd.f32 %v1239, %v1242
    %v1250 = vadd.f32 %v1249, %v1245
    %v1251 = vadd.f32 %v1250, %v1248
    %v1252 = vrot.slane %v1251, 4
    %v1253 = vadd.f32 %v1251, %v1252
    %v1254 = vrot.slane %v1253, 2
    %v1255 = vadd.f32 %v1253, %v1254
    %v1256 = vrot.slane %v1255, 1
    %v1257 = vadd.f32 %v1255, %v1256
    %s1258 = scalar_lea.vmem [#allocation6], 320
    %v1259 = vld [vmem:[%s1258] sm:$0xff]
    %v1260 = vld [vmem:[%s1258 + $0x8] sm:$0xff]
    %v1261 = vld [vmem:[%s1258 + $0x10] sm:$0xff]
    %v1262 = vld [vmem:[%s1258 + $0x18] sm:$0xff]
    %v1263 = vmul.f32 %v952, %v1259
    %v1264 = vmul.f32 %v953, %v1260
    %v1265 = vmul.f32 %v954, %v1261
    %v1266 = vmul.f32 %v955, %v1262
    %v1267 = vsel %vm964, %v1263, 0.0
    %1268 = vadd.xlane.f32.xlu0 %v1267
    %v1269 = vpop.xlane.xlu0 %1268
    %v1270 = vsel %vm964, %v1264, 0.0
    %1271 = vadd.xlane.f32.xlu0 %v1270
    %v1272 = vpop.xlane.xlu0 %1271
    %v1273 = vsel %vm964, %v1265, 0.0
    %1274 = vadd.xlane.f32.xlu0 %v1273
    %v1275 = vpop.xlane.xlu0 %1274
    %v1276 = vsel %vm964, %v1266, 0.0
    %1277 = vadd.xlane.f32.xlu0 %v1276
    %v1278 = vpop.xlane.xlu0 %1277
    %v1279 = vadd.f32 %v1269, %v1272
    %v1280 = vadd.f32 %v1279, %v1275
    %v1281 = vadd.f32 %v1280, %v1278
    %v1282 = vrot.slane %v1281, 4
    %v1283 = vadd.f32 %v1281, %v1282
    %v1284 = vrot.slane %v1283, 2
    %v1285 = vadd.f32 %v1283, %v1284
    %v1286 = vrot.slane %v1285, 1
    %v1287 = vadd.f32 %v1285, %v1286
    %v1288 = vsel %vm353, %v1017, %v1047
    %vm1289 = vcmask 15360
    %v1290 = vsel %vm1289, %v1288, %v1077
    %vm1291 = vcmask 23552
    %v1292 = vsel %vm1291, %v1290, %v1107
    %vm1293 = vcmask 31744
    %v1294 = vsel %vm1293, %v1292, %v1137
    %vm1295 = vcmask 39936
    %v1296 = vsel %vm1295, %v1294, %v1167
    %vm1297 = vcmask 48128
    %v1298 = vsel %vm1297, %v1296, %v1197
    %vm1299 = vcmask 56320
    %v1300 = vsel %vm1299, %v1298, %v1227
    %vm1301 = vcmask 64512
    %v1302 = vsel %vm1301, %v1300, %v1257
    %vm1303 = vcmask 72704
    %v1304 = vsel %vm1303, %v1302, %v1287
    %v1306 = vlaneseq
    %v1307 = vshrl.u32 %v1306, 7
    %v1308 = vsub.s32 0, %v1307
    %v1309 = vrot.slane %v986, %v1308
    %1310 = vrot.lane.b32.xlu0 %v1309, 127
    %v1311 = vpop.permute.xlu0 %1310
    %v1313 = vadd.f32 %v1304, %v1311
    %v1314 = vsub.f32 %v987, %v987
    %v1315 = vmul.f32 %v1314, 1.442695
    %v1316 = vpow.pop %v1315
    %v1317 = vadd.f32 %v1316, 0.0
    %v1318 = vlog2.pop %v1317
    %v1319 = vmul.f32 %v1318, 0.6931472
    %v1320 = vsub.f32 %v1314, %v1319
    %vm1321 = vcmask 0
    %1322 = vst.msk [vmem:[%s12] sm:$0x1] %vm1321, %v1320
    %vm1323 = vcmask 73728
    %v1324 = vsel %vm1323, %v1313, -inf
    %1325 = vmax.xlane.f32.xlu0 %v1324
    %v1326 = vpop.xlane.xlu0 %1325
    %v1327 = vsub.f32 %v1313, %v1326
    %v1328 = vmul.f32 %v1327, 1.442695
    %v1329 = vpow.pop %v1328
    %v1330 = vsel %vm1323, %v1329, 0.0
    %1331 = vadd.xlane.f32.xlu0 %v1330
    %v1332 = vpop.xlane.xlu0 %1331
    %v1333 = vlog2.pop %v1332
    %v1334 = vmul.f32 %v1333, 0.6931472
    %v1335 = vsub.f32 %v1327, %v1334
    %1336 = vst.msk [vmem:[#allocation9] sm:$0x1] %vm1323, %v1335
    %v1337 = vld [vmem:[#allocation5] sm:$0xff]
    %v1338 = vld [vmem:[#allocation5 + $0x8] sm:$0xff]
    %v1339 = vld [vmem:[#allocation5 + $0x10] sm:$0xff]
    %v1340 = vld [vmem:[#allocation5 + $0x18] sm:$0xff]
    %v1341 = vld [vmem:[#allocation5 + $0x20] sm:$0xff]
    %v1342 = vld [vmem:[#allocation5 + $0x28] sm:$0xff]
    %v1343 = vld [vmem:[#allocation5 + $0x30] sm:$0xff]
    %v1344 = vld [vmem:[#allocation5 + $0x38] sm:$0xff]
    %v1345 = vld [vmem:[#allocation6] sm:$0xff]
    %v1346 = vld [vmem:[#allocation6 + $0x8] sm:$0xff]
    %v1347 = vld [vmem:[#allocation6 + $0x10] sm:$0xff]
    %v1348 = vld [vmem:[#allocation6 + $0x18] sm:$0xff]
    %1353 = vrot.lane.b32.xlu0 %v1345, 102
    %v1354 = vpop.permute.xlu0 %1353
    %1355 = vrot.lane.b32.xlu0 %v1346, 102
    %v1356 = vpop.permute.xlu0 %1355
    %1357 = vrot.lane.b32.xlu0 %v1347, 102
    %v1358 = vpop.permute.xlu0 %1357
    %1359 = vrot.lane.b32.xlu0 %v1348, 102
    %v1360 = vpop.permute.xlu0 %1359
    %v1365 = vmul.f32 %v1337, %v1354
    %v1366 = vmul.f32 %v1338, %v1354
    %v1367 = vmul.f32 %v1339, %v1356
    %v1368 = vmul.f32 %v1340, %v1356
    %v1369 = vmul.f32 %v1341, %v1358
    %v1370 = vmul.f32 %v1342, %v1358
    %v1371 = vmul.f32 %v1343, %v1360
    %v1372 = vmul.f32 %v1344, %v1360
    %1381 = vrot.lane.b32.xlu0 %v1365, 26
    %v1382 = vpop.permute.xlu0 %1381
    %1383 = vrot.lane.b32.xlu0 %v1366, 26
    %v1384 = vpop.permute.xlu0 %1383
    %1385 = vrot.lane.b32.xlu0 %v1367, 26
    %v1386 = vpop.permute.xlu0 %1385
    %1387 = vrot.lane.b32.xlu0 %v1368, 26
    %v1388 = vpop.permute.xlu0 %1387
    %1389 = vrot.lane.b32.xlu0 %v1369, 26
    %v1390 = vpop.permute.xlu0 %1389
    %1391 = vrot.lane.b32.xlu0 %v1370, 26
    %v1392 = vpop.permute.xlu0 %1391
    %1393 = vrot.lane.b32.xlu0 %v1371, 26
    %v1394 = vpop.permute.xlu0 %1393
    %1395 = vrot.lane.b32.xlu0 %v1372, 26
    %v1396 = vpop.permute.xlu0 %1395
    %vm1397 = vcmask 211968
    %v1398 = vsel %vm1397, %v1382, %v1384
    %v1399 = vsel %vm1397, %v1386, %v1388
    %v1400 = vsel %vm1397, %v1390, %v1392
    %v1401 = vsel %vm1397, %v1394, %v1396
    %v1406 = vsel %vm964, %v1398, 0.0
    %1407 = vadd.xlane.f32.xlu0 %v1406
    %v1408 = vpop.xlane.xlu0 %1407
    %v1409 = vsel %vm964, %v1399, 0.0
    %1410 = vadd.xlane.f32.xlu0 %v1409
    %v1411 = vpop.xlane.xlu0 %1410
    %v1412 = vsel %vm964, %v1400, 0.0
    %1413 = vadd.xlane.f32.xlu0 %v1412
    %v1414 = vpop.xlane.xlu0 %1413
    %v1415 = vsel %vm964, %v1401, 0.0
    %1416 = vadd.xlane.f32.xlu0 %v1415
    %v1417 = vpop.xlane.xlu0 %1416
    %v1418 = vadd.f32 %v1408, %v1411
    %v1419 = vadd.f32 %v1418, %v1414
    %v1420 = vadd.f32 %v1419, %v1417
    %v1421 = vrot.slane %v1420, 4
    %v1422 = vadd.f32 %v1420, %v1421
    %v1423 = vrot.slane %v1422, 2
    %v1424 = vadd.f32 %v1422, %v1423
    %v1425 = vrot.slane %v1424, 1
    %v1426 = vadd.f32 %v1424, %v1425
    %v1427 = vld [vmem:[%s11] sm:$0x1]
    %v1428 = vadd.f32 %v1426, %v1427
    %v1429 = vld [vmem:[%s988] sm:$0xff]
    %v1430 = vld [vmem:[%s988 + $0x8] sm:$0xff]
    %v1431 = vld [vmem:[%s988 + $0x10] sm:$0xff]
    %v1432 = vld [vmem:[%s988 + $0x18] sm:$0xff]
    %1437 = vrot.lane.b32.xlu0 %v1429, 102
    %v1438 = vpop.permute.xlu0 %1437
    %1439 = vrot.lane.b32.xlu0 %v1430, 102
    %v1440 = vpop.permute.xlu0 %1439
    %1441 = vrot.lane.b32.xlu0 %v1431, 102
    %v1442 = vpop.permute.xlu0 %1441
    %1443 = vrot.lane.b32.xlu0 %v1432, 102
    %v1444 = vpop.permute.xlu0 %1443
    %v1449 = vmul.f32 %v1337, %v1438
    %v1450 = vmul.f32 %v1338, %v1438
    %v1451 = vmul.f32 %v1339, %v1440
    %v1452 = vmul.f32 %v1340, %v1440
    %v1453 = vmul.f32 %v1341, %v1442
    %v1454 = vmul.f32 %v1342, %v1442
    %v1455 = vmul.f32 %v1343, %v1444
    %v1456 = vmul.f32 %v1344, %v1444
    %1465 = vrot.lane.b32.xlu0 %v1449, 26
    %v1466 = vpop.permute.xlu0 %1465
    %1467 = vrot.lane.b32.xlu0 %v1450, 26
    %v1468 = vpop.permute.xlu0 %1467
    %1469 = vrot.lane.b32.xlu0 %v1451, 26
    %v1470 = vpop.permute.xlu0 %1469
    %1471 = vrot.lane.b32.xlu0 %v1452, 26
    %v1472 = vpop.permute.xlu0 %1471
    %1473 = vrot.lane.b32.xlu0 %v1453, 26
    %v1474 = vpop.permute.xlu0 %1473
    %1475 = vrot.lane.b32.xlu0 %v1454, 26
    %v1476 = vpop.permute.xlu0 %1475
    %1477 = vrot.lane.b32.xlu0 %v1455, 26
    %v1478 = vpop.permute.xlu0 %1477
    %1479 = vrot.lane.b32.xlu0 %v1456, 26
    %v1480 = vpop.permute.xlu0 %1479
    %v1481 = vsel %vm1397, %v1466, %v1468
    %v1482 = vsel %vm1397, %v1470, %v1472
    %v1483 = vsel %vm1397, %v1474, %v1476
    %v1484 = vsel %vm1397, %v1478, %v1480
    %v1489 = vsel %vm964, %v1481, 0.0
    %1490 = vadd.xlane.f32.xlu0 %v1489
    %v1491 = vpop.xlane.xlu0 %1490
    %v1492 = vsel %vm964, %v1482, 0.0
    %1493 = vadd.xlane.f32.xlu0 %v1492
    %v1494 = vpop.xlane.xlu0 %1493
    %v1495 = vsel %vm964, %v1483, 0.0
    %1496 = vadd.xlane.f32.xlu0 %v1495
    %v1497 = vpop.xlane.xlu0 %1496
    %v1498 = vsel %vm964, %v1484, 0.0
    %1499 = vadd.xlane.f32.xlu0 %v1498
    %v1500 = vpop.xlane.xlu0 %1499
    %v1501 = vadd.f32 %v1491, %v1494
    %v1502 = vadd.f32 %v1501, %v1497
    %v1503 = vadd.f32 %v1502, %v1500
    %v1504 = vrot.slane %v1503, 4
    %v1505 = vadd.f32 %v1503, %v1504
    %v1506 = vrot.slane %v1505, 2
    %v1507 = vadd.f32 %v1505, %v1506
    %v1508 = vrot.slane %v1507, 1
    %v1509 = vadd.f32 %v1507, %v1508
    %v1510 = vld [vmem:[%s1018] sm:$0xff]
    %v1511 = vld [vmem:[%s1018 + $0x8] sm:$0xff]
    %v1512 = vld [vmem:[%s1018 + $0x10] sm:$0xff]
    %v1513 = vld [vmem:[%s1018 + $0x18] sm:$0xff]
    %1518 = vrot.lane.b32.xlu0 %v1510, 102
    %v1519 = vpop.permute.xlu0 %1518
    %1520 = vrot.lane.b32.xlu0 %v1511, 102
    %v1521 = vpop.permute.xlu0 %1520
    %1522 = vrot.lane.b32.xlu0 %v1512, 102
    %v1523 = vpop.permute.xlu0 %1522
    %1524 = vrot.lane.b32.xlu0 %v1513, 102
    %v1525 = vpop.permute.xlu0 %1524
    %v1530 = vmul.f32 %v1337, %v1519
    %v1531 = vmul.f32 %v1338, %v1519
    %v1532 = vmul.f32 %v1339, %v1521
    %v1533 = vmul.f32 %v1340, %v1521
    %v1534 = vmul.f32 %v1341, %v1523
    %v1535 = vmul.f32 %v1342, %v1523
    %v1536 = vmul.f32 %v1343, %v1525
    %v1537 = vmul.f32 %v1344, %v1525
    %1546 = vrot.lane.b32.xlu0 %v1530, 26
    %v1547 = vpop.permute.xlu0 %1546
    %1548 = vrot.lane.b32.xlu0 %v1531, 26
    %v1549 = vpop.permute.xlu0 %1548
    %1550 = vrot.lane.b32.xlu0 %v1532, 26
    %v1551 = vpop.permute.xlu0 %1550
    %1552 = vrot.lane.b32.xlu0 %v1533, 26
    %v1553 = vpop.permute.xlu0 %1552
    %1554 = vrot.lane.b32.xlu0 %v1534, 26
    %v1555 = vpop.permute.xlu0 %1554
    %1556 = vrot.lane.b32.xlu0 %v1535, 26
    %v1557 = vpop.permute.xlu0 %1556
    %1558 = vrot.lane.b32.xlu0 %v1536, 26
    %v1559 = vpop.permute.xlu0 %1558
    %1560 = vrot.lane.b32.xlu0 %v1537, 26
    %v1561 = vpop.permute.xlu0 %1560
    %v1562 = vsel %vm1397, %v1547, %v1549
    %v1563 = vsel %vm1397, %v1551, %v1553
    %v1564 = vsel %vm1397, %v1555, %v1557
    %v1565 = vsel %vm1397, %v1559, %v1561
    %v1570 = vsel %vm964, %v1562, 0.0
    %1571 = vadd.xlane.f32.xlu0 %v1570
    %v1572 = vpop.xlane.xlu0 %1571
    %v1573 = vsel %vm964, %v1563, 0.0
    %1574 = vadd.xlane.f32.xlu0 %v1573
    %v1575 = vpop.xlane.xlu0 %1574
    %v1576 = vsel %vm964, %v1564, 0.0
    %1577 = vadd.xlane.f32.xlu0 %v1576
    %v1578 = vpop.xlane.xlu0 %1577
    %v1579 = vsel %vm964, %v1565, 0.0
    %1580 = vadd.xlane.f32.xlu0 %v1579
    %v1581 = vpop.xlane.xlu0 %1580
    %v1582 = vadd.f32 %v1572, %v1575
    %v1583 = vadd.f32 %v1582, %v1578
    %v1584 = vadd.f32 %v1583, %v1581
    %v1585 = vrot.slane %v1584, 4
    %v1586 = vadd.f32 %v1584, %v1585
    %v1587 = vrot.slane %v1586, 2
    %v1588 = vadd.f32 %v1586, %v1587
    %v1589 = vrot.slane %v1588, 1
    %v1590 = vadd.f32 %v1588, %v1589
    %v1591 = vld [vmem:[%s1048] sm:$0xff]
    %v1592 = vld [vmem:[%s1048 + $0x8] sm:$0xff]
    %v1593 = vld [vmem:[%s1048 + $0x10] sm:$0xff]
    %v1594 = vld [vmem:[%s1048 + $0x18] sm:$0xff]
    %1599 = vrot.lane.b32.xlu0 %v1591, 102
    %v1600 = vpop.permute.xlu0 %1599
    %1601 = vrot.lane.b32.xlu0 %v1592, 102
    %v1602 = vpop.permute.xlu0 %1601
    %1603 = vrot.lane.b32.xlu0 %v1593, 102
    %v1604 = vpop.permute.xlu0 %1603
    %1605 = vrot.lane.b32.xlu0 %v1594, 102
    %v1606 = vpop.permute.xlu0 %1605
    %v1611 = vmul.f32 %v1337, %v1600
    %v1612 = vmul.f32 %v1338, %v1600
    %v1613 = vmul.f32 %v1339, %v1602
    %v1614 = vmul.f32 %v1340, %v1602
    %v1615 = vmul.f32 %v1341, %v1604
    %v1616 = vmul.f32 %v1342, %v1604
    %v1617 = vmul.f32 %v1343, %v1606
    %v1618 = vmul.f32 %v1344, %v1606
    %1627 = vrot.lane.b32.xlu0 %v1611, 26
    %v1628 = vpop.permute.xlu0 %1627
    %1629 = vrot.lane.b32.xlu0 %v1612, 26
    %v1630 = vpop.permute.xlu0 %1629
    %1631 = vrot.lane.b32.xlu0 %v1613, 26
    %v1632 = vpop.permute.xlu0 %1631
    %1633 = vrot.lane.b32.xlu0 %v1614, 26
    %v1634 = vpop.permute.xlu0 %1633
    %1635 = vrot.lane.b32.xlu0 %v1615, 26
    %v1636 = vpop.permute.xlu0 %1635
    %1637 = vrot.lane.b32.xlu0 %v1616, 26
    %v1638 = vpop.permute.xlu0 %1637
    %1639 = vrot.lane.b32.xlu0 %v1617, 26
    %v1640 = vpop.permute.xlu0 %1639
    %1641 = vrot.lane.b32.xlu0 %v1618, 26
    %v1642 = vpop.permute.xlu0 %1641
    %v1643 = vsel %vm1397, %v1628, %v1630
    %v1644 = vsel %vm1397, %v1632, %v1634
    %v1645 = vsel %vm1397, %v1636, %v1638
    %v1646 = vsel %vm1397, %v1640, %v1642
    %v1651 = vsel %vm964, %v1643, 0.0
    %1652 = vadd.xlane.f32.xlu0 %v1651
    %v1653 = vpop.xlane.xlu0 %1652
    %v1654 = vsel %vm964, %v1644, 0.0
    %1655 = vadd.xlane.f32.xlu0 %v1654
    %v1656 = vpop.xlane.xlu0 %1655
    %v1657 = vsel %vm964, %v1645, 0.0
    %1658 = vadd.xlane.f32.xlu0 %v1657
    %v1659 = vpop.xlane.xlu0 %1658
    %v1660 = vsel %vm964, %v1646, 0.0
    %1661 = vadd.xlane.f32.xlu0 %v1660
    %v1662 = vpop.xlane.xlu0 %1661
    %v1663 = vadd.f32 %v1653, %v1656
    %v1664 = vadd.f32 %v1663, %v1659
    %v1665 = vadd.f32 %v1664, %v1662
    %v1666 = vrot.slane %v1665, 4
    %v1667 = vadd.f32 %v1665, %v1666
    %v1668 = vrot.slane %v1667, 2
    %v1669 = vadd.f32 %v1667, %v1668
    %v1670 = vrot.slane %v1669, 1
    %v1671 = vadd.f32 %v1669, %v1670
    %v1672 = vld [vmem:[%s1078] sm:$0xff]
    %v1673 = vld [vmem:[%s1078 + $0x8] sm:$0xff]
    %v1674 = vld [vmem:[%s1078 + $0x10] sm:$0xff]
    %v1675 = vld [vmem:[%s1078 + $0x18] sm:$0xff]
    %1680 = vrot.lane.b32.xlu0 %v1672, 102
    %v1681 = vpop.permute.xlu0 %1680
    %1682 = vrot.lane.b32.xlu0 %v1673, 102
    %v1683 = vpop.permute.xlu0 %1682
    %1684 = vrot.lane.b32.xlu0 %v1674, 102
    %v1685 = vpop.permute.xlu0 %1684
    %1686 = vrot.lane.b32.xlu0 %v1675, 102
    %v1687 = vpop.permute.xlu0 %1686
    %v1692 = vmul.f32 %v1337, %v1681
    %v1693 = vmul.f32 %v1338, %v1681
    %v1694 = vmul.f32 %v1339, %v1683
    %v1695 = vmul.f32 %v1340, %v1683
    %v1696 = vmul.f32 %v1341, %v1685
    %v1697 = vmul.f32 %v1342, %v1685
    %v1698 = vmul.f32 %v1343, %v1687
    %v1699 = vmul.f32 %v1344, %v1687
    %1708 = vrot.lane.b32.xlu0 %v1692, 26
    %v1709 = vpop.permute.xlu0 %1708
    %1710 = vrot.lane.b32.xlu0 %v1693, 26
    %v1711 = vpop.permute.xlu0 %1710
    %1712 = vrot.lane.b32.xlu0 %v1694, 26
    %v1713 = vpop.permute.xlu0 %1712
    %1714 = vrot.lane.b32.xlu0 %v1695, 26
    %v1715 = vpop.permute.xlu0 %1714
    %1716 = vrot.lane.b32.xlu0 %v1696, 26
    %v1717 = vpop.permute.xlu0 %1716
    %1718 = vrot.lane.b32.xlu0 %v1697, 26
    %v1719 = vpop.permute.xlu0 %1718
    %1720 = vrot.lane.b32.xlu0 %v1698, 26
    %v1721 = vpop.permute.xlu0 %1720
    %1722 = vrot.lane.b32.xlu0 %v1699, 26
    %v1723 = vpop.permute.xlu0 %1722
    %v1724 = vsel %vm1397, %v1709, %v1711
    %v1725 = vsel %vm1397, %v1713, %v1715
    %v1726 = vsel %vm1397, %v1717, %v1719
    %v1727 = vsel %vm1397, %v1721, %v1723
    %v1732 = vsel %vm964, %v1724, 0.0
    %1733 = vadd.xlane.f32.xlu0 %v1732
    %v1734 = vpop.xlane.xlu0 %1733
    %v1735 = vsel %vm964, %v1725, 0.0
    %1736 = vadd.xlane.f32.xlu0 %v1735
    %v1737 = vpop.xlane.xlu0 %1736
    %v1738 = vsel %vm964, %v1726, 0.0
    %1739 = vadd.xlane.f32.xlu0 %v1738
    %v1740 = vpop.xlane.xlu0 %1739
    %v1741 = vsel %vm964, %v1727, 0.0
    %1742 = vadd.xlane.f32.xlu0 %v1741
    %v1743 = vpop.xlane.xlu0 %1742
    %v1744 = vadd.f32 %v1734, %v1737
    %v1745 = vadd.f32 %v1744, %v1740
    %v1746 = vadd.f32 %v1745, %v1743
    %v1747 = vrot.slane %v1746, 4
    %v1748 = vadd.f32 %v1746, %v1747
    %v1749 = vrot.slane %v1748, 2
    %v1750 = vadd.f32 %v1748, %v1749
    %v1751 = vrot.slane %v1750, 1
    %v1752 = vadd.f32 %v1750, %v1751
    %v1753 = vld [vmem:[%s1108] sm:$0xff]
    %v1754 = vld [vmem:[%s1108 + $0x8] sm:$0xff]
    %v1755 = vld [vmem:[%s1108 + $0x10] sm:$0xff]
    %v1756 = vld [vmem:[%s1108 + $0x18] sm:$0xff]
    %1761 = vrot.lane.b32.xlu0 %v1753, 102
    %v1762 = vpop.permute.xlu0 %1761
    %1763 = vrot.lane.b32.xlu0 %v1754, 102
    %v1764 = vpop.permute.xlu0 %1763
    %1765 = vrot.lane.b32.xlu0 %v1755, 102
    %v1766 = vpop.permute.xlu0 %1765
    %1767 = vrot.lane.b32.xlu0 %v1756, 102
    %v1768 = vpop.permute.xlu0 %1767
    %v1773 = vmul.f32 %v1337, %v1762
    %v1774 = vmul.f32 %v1338, %v1762
    %v1775 = vmul.f32 %v1339, %v1764
    %v1776 = vmul.f32 %v1340, %v1764
    %v1777 = vmul.f32 %v1341, %v1766
    %v1778 = vmul.f32 %v1342, %v1766
    %v1779 = vmul.f32 %v1343, %v1768
    %v1780 = vmul.f32 %v1344, %v1768
    %1789 = vrot.lane.b32.xlu0 %v1773, 26
    %v1790 = vpop.permute.xlu0 %1789
    %1791 = vrot.lane.b32.xlu0 %v1774, 26
    %v1792 = vpop.permute.xlu0 %1791
    %1793 = vrot.lane.b32.xlu0 %v1775, 26
    %v1794 = vpop.permute.xlu0 %1793
    %1795 = vrot.lane.b32.xlu0 %v1776, 26
    %v1796 = vpop.permute.xlu0 %1795
    %1797 = vrot.lane.b32.xlu0 %v1777, 26
    %v1798 = vpop.permute.xlu0 %1797
    %1799 = vrot.lane.b32.xlu0 %v1778, 26
    %v1800 = vpop.permute.xlu0 %1799
    %1801 = vrot.lane.b32.xlu0 %v1779, 26
    %v1802 = vpop.permute.xlu0 %1801
    %1803 = vrot.lane.b32.xlu0 %v1780, 26
    %v1804 = vpop.permute.xlu0 %1803
    %v1805 = vsel %vm1397, %v1790, %v1792
    %v1806 = vsel %vm1397, %v1794, %v1796
    %v1807 = vsel %vm1397, %v1798, %v1800
    %v1808 = vsel %vm1397, %v1802, %v1804
    %v1813 = vsel %vm964, %v1805, 0.0
    %1814 = vadd.xlane.f32.xlu0 %v1813
    %v1815 = vpop.xlane.xlu0 %1814
    %v1816 = vsel %vm964, %v1806, 0.0
    %1817 = vadd.xlane.f32.xlu0 %v1816
    %v1818 = vpop.xlane.xlu0 %1817
    %v1819 = vsel %vm964, %v1807, 0.0
    %1820 = vadd.xlane.f32.xlu0 %v1819
    %v1821 = vpop.xlane.xlu0 %1820
    %v1822 = vsel %vm964, %v1808, 0.0
    %1823 = vadd.xlane.f32.xlu0 %v1822
    %v1824 = vpop.xlane.xlu0 %1823
    %v1825 = vadd.f32 %v1815, %v1818
    %v1826 = vadd.f32 %v1825, %v1821
    %v1827 = vadd.f32 %v1826, %v1824
    %v1828 = vrot.slane %v1827, 4
    %v1829 = vadd.f32 %v1827, %v1828
    %v1830 = vrot.slane %v1829, 2
    %v1831 = vadd.f32 %v1829, %v1830
    %v1832 = vrot.slane %v1831, 1
    %v1833 = vadd.f32 %v1831, %v1832
    %v1834 = vld [vmem:[%s1138] sm:$0xff]
    %v1835 = vld [vmem:[%s1138 + $0x8] sm:$0xff]
    %v1836 = vld [vmem:[%s1138 + $0x10] sm:$0xff]
    %v1837 = vld [vmem:[%s1138 + $0x18] sm:$0xff]
    %1842 = vrot.lane.b32.xlu0 %v1834, 102
    %v1843 = vpop.permute.xlu0 %1842
    %1844 = vrot.lane.b32.xlu0 %v1835, 102
    %v1845 = vpop.permute.xlu0 %1844
    %1846 = vrot.lane.b32.xlu0 %v1836, 102
    %v1847 = vpop.permute.xlu0 %1846
    %1848 = vrot.lane.b32.xlu0 %v1837, 102
    %v1849 = vpop.permute.xlu0 %1848
    %v1854 = vmul.f32 %v1337, %v1843
    %v1855 = vmul.f32 %v1338, %v1843
    %v1856 = vmul.f32 %v1339, %v1845
    %v1857 = vmul.f32 %v1340, %v1845
    %v1858 = vmul.f32 %v1341, %v1847
    %v1859 = vmul.f32 %v1342, %v1847
    %v1860 = vmul.f32 %v1343, %v1849
    %v1861 = vmul.f32 %v1344, %v1849
    %1870 = vrot.lane.b32.xlu0 %v1854, 26
    %v1871 = vpop.permute.xlu0 %1870
    %1872 = vrot.lane.b32.xlu0 %v1855, 26
    %v1873 = vpop.permute.xlu0 %1872
    %1874 = vrot.lane.b32.xlu0 %v1856, 26
    %v1875 = vpop.permute.xlu0 %1874
    %1876 = vrot.lane.b32.xlu0 %v1857, 26
    %v1877 = vpop.permute.xlu0 %1876
    %1878 = vrot.lane.b32.xlu0 %v1858, 26
    %v1879 = vpop.permute.xlu0 %1878
    %1880 = vrot.lane.b32.xlu0 %v1859, 26
    %v1881 = vpop.permute.xlu0 %1880
    %1882 = vrot.lane.b32.xlu0 %v1860, 26
    %v1883 = vpop.permute.xlu0 %1882
    %1884 = vrot.lane.b32.xlu0 %v1861, 26
    %v1885 = vpop.permute.xlu0 %1884
    %v1886 = vsel %vm1397, %v1871, %v1873
    %v1887 = vsel %vm1397, %v1875, %v1877
    %v1888 = vsel %vm1397, %v1879, %v1881
    %v1889 = vsel %vm1397, %v1883, %v1885
    %v1894 = vsel %vm964, %v1886, 0.0
    %1895 = vadd.xlane.f32.xlu0 %v1894
    %v1896 = vpop.xlane.xlu0 %1895
    %v1897 = vsel %vm964, %v1887, 0.0
    %1898 = vadd.xlane.f32.xlu0 %v1897
    %v1899 = vpop.xlane.xlu0 %1898
    %v1900 = vsel %vm964, %v1888, 0.0
    %1901 = vadd.xlane.f32.xlu0 %v1900
    %v1902 = vpop.xlane.xlu0 %1901
    %v1903 = vsel %vm964, %v1889, 0.0
    %1904 = vadd.xlane.f32.xlu0 %v1903
    %v1905 = vpop.xlane.xlu0 %1904
    %v1906 = vadd.f32 %v1896, %v1899
    %v1907 = vadd.f32 %v1906, %v1902
    %v1908 = vadd.f32 %v1907, %v1905
    %v1909 = vrot.slane %v1908, 4
    %v1910 = vadd.f32 %v1908, %v1909
    %v1911 = vrot.slane %v1910, 2
    %v1912 = vadd.f32 %v1910, %v1911
    %v1913 = vrot.slane %v1912, 1
    %v1914 = vadd.f32 %v1912, %v1913
    %v1915 = vld [vmem:[%s1168] sm:$0xff]
    %v1916 = vld [vmem:[%s1168 + $0x8] sm:$0xff]
    %v1917 = vld [vmem:[%s1168 + $0x10] sm:$0xff]
    %v1918 = vld [vmem:[%s1168 + $0x18] sm:$0xff]
    %1923 = vrot.lane.b32.xlu0 %v1915, 102
    %v1924 = vpop.permute.xlu0 %1923
    %1925 = vrot.lane.b32.xlu0 %v1916, 102
    %v1926 = vpop.permute.xlu0 %1925
    %1927 = vrot.lane.b32.xlu0 %v1917, 102
    %v1928 = vpop.permute.xlu0 %1927
    %1929 = vrot.lane.b32.xlu0 %v1918, 102
    %v1930 = vpop.permute.xlu0 %1929
    %v1935 = vmul.f32 %v1337, %v1924
    %v1936 = vmul.f32 %v1338, %v1924
    %v1937 = vmul.f32 %v1339, %v1926
    %v1938 = vmul.f32 %v1340, %v1926
    %v1939 = vmul.f32 %v1341, %v1928
    %v1940 = vmul.f32 %v1342, %v1928
    %v1941 = vmul.f32 %v1343, %v1930
    %v1942 = vmul.f32 %v1344, %v1930
    %1951 = vrot.lane.b32.xlu0 %v1935, 26
    %v1952 = vpop.permute.xlu0 %1951
    %1953 = vrot.lane.b32.xlu0 %v1936, 26
    %v1954 = vpop.permute.xlu0 %1953
    %1955 = vrot.lane.b32.xlu0 %v1937, 26
    %v1956 = vpop.permute.xlu0 %1955
    %1957 = vrot.lane.b32.xlu0 %v1938, 26
    %v1958 = vpop.permute.xlu0 %1957
    %1959 = vrot.lane.b32.xlu0 %v1939, 26
    %v1960 = vpop.permute.xlu0 %1959
    %1961 = vrot.lane.b32.xlu0 %v1940, 26
    %v1962 = vpop.permute.xlu0 %1961
    %1963 = vrot.lane.b32.xlu0 %v1941, 26
    %v1964 = vpop.permute.xlu0 %1963
    %1965 = vrot.lane.b32.xlu0 %v1942, 26
    %v1966 = vpop.permute.xlu0 %1965
    %v1967 = vsel %vm1397, %v1952, %v1954
    %v1968 = vsel %vm1397, %v1956, %v1958
    %v1969 = vsel %vm1397, %v1960, %v1962
    %v1970 = vsel %vm1397, %v1964, %v1966
    %v1975 = vsel %vm964, %v1967, 0.0
    %1976 = vadd.xlane.f32.xlu0 %v1975
    %v1977 = vpop.xlane.xlu0 %1976
    %v1978 = vsel %vm964, %v1968, 0.0
    %1979 = vadd.xlane.f32.xlu0 %v1978
    %v1980 = vpop.xlane.xlu0 %1979
    %v1981 = vsel %vm964, %v1969, 0.0
    %1982 = vadd.xlane.f32.xlu0 %v1981
    %v1983 = vpop.xlane.xlu0 %1982
    %v1984 = vsel %vm964, %v1970, 0.0
    %1985 = vadd.xlane.f32.xlu0 %v1984
    %v1986 = vpop.xlane.xlu0 %1985
    %v1987 = vadd.f32 %v1977, %v1980
    %v1988 = vadd.f32 %v1987, %v1983
    %v1989 = vadd.f32 %v1988, %v1986
    %v1990 = vrot.slane %v1989, 4
    %v1991 = vadd.f32 %v1989, %v1990
    %v1992 = vrot.slane %v1991, 2
    %v1993 = vadd.f32 %v1991, %v1992
    %v1994 = vrot.slane %v1993, 1
    %v1995 = vadd.f32 %v1993, %v1994
    %v1996 = vld [vmem:[%s1198] sm:$0xff]
    %v1997 = vld [vmem:[%s1198 + $0x8] sm:$0xff]
    %v1998 = vld [vmem:[%s1198 + $0x10] sm:$0xff]
    %v1999 = vld [vmem:[%s1198 + $0x18] sm:$0xff]
    %2004 = vrot.lane.b32.xlu0 %v1996, 102
    %v2005 = vpop.permute.xlu0 %2004
    %2006 = vrot.lane.b32.xlu0 %v1997, 102
    %v2007 = vpop.permute.xlu0 %2006
    %2008 = vrot.lane.b32.xlu0 %v1998, 102
    %v2009 = vpop.permute.xlu0 %2008
    %2010 = vrot.lane.b32.xlu0 %v1999, 102
    %v2011 = vpop.permute.xlu0 %2010
    %v2016 = vmul.f32 %v1337, %v2005
    %v2017 = vmul.f32 %v1338, %v2005
    %v2018 = vmul.f32 %v1339, %v2007
    %v2019 = vmul.f32 %v1340, %v2007
    %v2020 = vmul.f32 %v1341, %v2009
    %v2021 = vmul.f32 %v1342, %v2009
    %v2022 = vmul.f32 %v1343, %v2011
    %v2023 = vmul.f32 %v1344, %v2011
    %2032 = vrot.lane.b32.xlu0 %v2016, 26
    %v2033 = vpop.permute.xlu0 %2032
    %2034 = vrot.lane.b32.xlu0 %v2017, 26
    %v2035 = vpop.permute.xlu0 %2034
    %2036 = vrot.lane.b32.xlu0 %v2018, 26
    %v2037 = vpop.permute.xlu0 %2036
    %2038 = vrot.lane.b32.xlu0 %v2019, 26
    %v2039 = vpop.permute.xlu0 %2038
    %2040 = vrot.lane.b32.xlu0 %v2020, 26
    %v2041 = vpop.permute.xlu0 %2040
    %2042 = vrot.lane.b32.xlu0 %v2021, 26
    %v2043 = vpop.permute.xlu0 %2042
    %2044 = vrot.lane.b32.xlu0 %v2022, 26
    %v2045 = vpop.permute.xlu0 %2044
    %2046 = vrot.lane.b32.xlu0 %v2023, 26
    %v2047 = vpop.permute.xlu0 %2046
    %v2048 = vsel %vm1397, %v2033, %v2035
    %v2049 = vsel %vm1397, %v2037, %v2039
    %v2050 = vsel %vm1397, %v2041, %v2043
    %v2051 = vsel %vm1397, %v2045, %v2047
    %v2056 = vsel %vm964, %v2048, 0.0
    %2057 = vadd.xlane.f32.xlu0 %v2056
    %v2058 = vpop.xlane.xlu0 %2057
    %v2059 = vsel %vm964, %v2049, 0.0
    %2060 = vadd.xlane.f32.xlu0 %v2059
    %v2061 = vpop.xlane.xlu0 %2060
    %v2062 = vsel %vm964, %v2050, 0.0
    %2063 = vadd.xlane.f32.xlu0 %v2062
    %v2064 = vpop.xlane.xlu0 %2063
    %v2065 = vsel %vm964, %v2051, 0.0
    %2066 = vadd.xlane.f32.xlu0 %v2065
    %v2067 = vpop.xlane.xlu0 %2066
    %v2068 = vadd.f32 %v2058, %v2061
    %v2069 = vadd.f32 %v2068, %v2064
    %v2070 = vadd.f32 %v2069, %v2067
    %v2071 = vrot.slane %v2070, 4
    %v2072 = vadd.f32 %v2070, %v2071
    %v2073 = vrot.slane %v2072, 2
    %v2074 = vadd.f32 %v2072, %v2073
    %v2075 = vrot.slane %v2074, 1
    %v2076 = vadd.f32 %v2074, %v2075
    %v2077 = vld [vmem:[%s1228] sm:$0xff]
    %v2078 = vld [vmem:[%s1228 + $0x8] sm:$0xff]
    %v2079 = vld [vmem:[%s1228 + $0x10] sm:$0xff]
    %v2080 = vld [vmem:[%s1228 + $0x18] sm:$0xff]
    %2085 = vrot.lane.b32.xlu0 %v2077, 102
    %v2086 = vpop.permute.xlu0 %2085
    %2087 = vrot.lane.b32.xlu0 %v2078, 102
    %v2088 = vpop.permute.xlu0 %2087
    %2089 = vrot.lane.b32.xlu0 %v2079, 102
    %v2090 = vpop.permute.xlu0 %2089
    %2091 = vrot.lane.b32.xlu0 %v2080, 102
    %v2092 = vpop.permute.xlu0 %2091
    %v2097 = vmul.f32 %v1337, %v2086
    %v2098 = vmul.f32 %v1338, %v2086
    %v2099 = vmul.f32 %v1339, %v2088
    %v2100 = vmul.f32 %v1340, %v2088
    %v2101 = vmul.f32 %v1341, %v2090
    %v2102 = vmul.f32 %v1342, %v2090
    %v2103 = vmul.f32 %v1343, %v2092
    %v2104 = vmul.f32 %v1344, %v2092
    %2113 = vrot.lane.b32.xlu0 %v2097, 26
    %v2114 = vpop.permute.xlu0 %2113
    %2115 = vrot.lane.b32.xlu0 %v2098, 26
    %v2116 = vpop.permute.xlu0 %2115
    %2117 = vrot.lane.b32.xlu0 %v2099, 26
    %v2118 = vpop.permute.xlu0 %2117
    %2119 = vrot.lane.b32.xlu0 %v2100, 26
    %v2120 = vpop.permute.xlu0 %2119
    %2121 = vrot.lane.b32.xlu0 %v2101, 26
    %v2122 = vpop.permute.xlu0 %2121
    %2123 = vrot.lane.b32.xlu0 %v2102, 26
    %v2124 = vpop.permute.xlu0 %2123
    %2125 = vrot.lane.b32.xlu0 %v2103, 26
    %v2126 = vpop.permute.xlu0 %2125
    %2127 = vrot.lane.b32.xlu0 %v2104, 26
    %v2128 = vpop.permute.xlu0 %2127
    %v2129 = vsel %vm1397, %v2114, %v2116
    %v2130 = vsel %vm1397, %v2118, %v2120
    %v2131 = vsel %vm1397, %v2122, %v2124
    %v2132 = vsel %vm1397, %v2126, %v2128
    %v2137 = vsel %vm964, %v2129, 0.0
    %2138 = vadd.xlane.f32.xlu0 %v2137
    %v2139 = vpop.xlane.xlu0 %2138
    %v2140 = vsel %vm964, %v2130, 0.0
    %2141 = vadd.xlane.f32.xlu0 %v2140
    %v2142 = vpop.xlane.xlu0 %2141
    %v2143 = vsel %vm964, %v2131, 0.0
    %2144 = vadd.xlane.f32.xlu0 %v2143
    %v2145 = vpop.xlane.xlu0 %2144
    %v2146 = vsel %vm964, %v2132, 0.0
    %2147 = vadd.xlane.f32.xlu0 %v2146
    %v2148 = vpop.xlane.xlu0 %2147
    %v2149 = vadd.f32 %v2139, %v2142
    %v2150 = vadd.f32 %v2149, %v2145
    %v2151 = vadd.f32 %v2150, %v2148
    %v2152 = vrot.slane %v2151, 4
    %v2153 = vadd.f32 %v2151, %v2152
    %v2154 = vrot.slane %v2153, 2
    %v2155 = vadd.f32 %v2153, %v2154
    %v2156 = vrot.slane %v2155, 1
    %v2157 = vadd.f32 %v2155, %v2156
    %v2158 = vld [vmem:[%s1258] sm:$0xff]
    %v2159 = vld [vmem:[%s1258 + $0x8] sm:$0xff]
    %v2160 = vld [vmem:[%s1258 + $0x10] sm:$0xff]
    %v2161 = vld [vmem:[%s1258 + $0x18] sm:$0xff]
    %2166 = vrot.lane.b32.xlu0 %v2158, 102
    %v2167 = vpop.permute.xlu0 %2166
    %2168 = vrot.lane.b32.xlu0 %v2159, 102
    %v2169 = vpop.permute.xlu0 %2168
    %2170 = vrot.lane.b32.xlu0 %v2160, 102
    %v2171 = vpop.permute.xlu0 %2170
    %2172 = vrot.lane.b32.xlu0 %v2161, 102
    %v2173 = vpop.permute.xlu0 %2172
    %v2178 = vmul.f32 %v1337, %v2167
    %v2179 = vmul.f32 %v1338, %v2167
    %v2180 = vmul.f32 %v1339, %v2169
    %v2181 = vmul.f32 %v1340, %v2169
    %v2182 = vmul.f32 %v1341, %v2171
    %v2183 = vmul.f32 %v1342, %v2171
    %v2184 = vmul.f32 %v1343, %v2173
    %v2185 = vmul.f32 %v1344, %v2173
    %2194 = vrot.lane.b32.xlu0 %v2178, 26
    %v2195 = vpop.permute.xlu0 %2194
    %2196 = vrot.lane.b32.xlu0 %v2179, 26
    %v2197 = vpop.permute.xlu0 %2196
    %2198 = vrot.lane.b32.xlu0 %v2180, 26
    %v2199 = vpop.permute.xlu0 %2198
    %2200 = vrot.lane.b32.xlu0 %v2181, 26
    %v2201 = vpop.permute.xlu0 %2200
    %2202 = vrot.lane.b32.xlu0 %v2182, 26
    %v2203 = vpop.permute.xlu0 %2202
    %2204 = vrot.lane.b32.xlu0 %v2183, 26
    %v2205 = vpop.permute.xlu0 %2204
    %2206 = vrot.lane.b32.xlu0 %v2184, 26
    %v2207 = vpop.permute.xlu0 %2206
    %2208 = vrot.lane.b32.xlu0 %v2185, 26
    %v2209 = vpop.permute.xlu0 %2208
    %v2210 = vsel %vm1397, %v2195, %v2197
    %v2211 = vsel %vm1397, %v2199, %v2201
    %v2212 = vsel %vm1397, %v2203, %v2205
    %v2213 = vsel %vm1397, %v2207, %v2209
    %v2218 = vsel %vm964, %v2210, 0.0
    %2219 = vadd.xlane.f32.xlu0 %v2218
    %v2220 = vpop.xlane.xlu0 %2219
    %v2221 = vsel %vm964, %v2211, 0.0
    %2222 = vadd.xlane.f32.xlu0 %v2221
    %v2223 = vpop.xlane.xlu0 %2222
    %v2224 = vsel %vm964, %v2212, 0.0
    %2225 = vadd.xlane.f32.xlu0 %v2224
    %v2226 = vpop.xlane.xlu0 %2225
    %v2227 = vsel %vm964, %v2213, 0.0
    %2228 = vadd.xlane.f32.xlu0 %v2227
    %v2229 = vpop.xlane.xlu0 %2228
    %v2230 = vadd.f32 %v2220, %v2223
    %v2231 = vadd.f32 %v2230, %v2226
    %v2232 = vadd.f32 %v2231, %v2229
    %v2233 = vrot.slane %v2232, 4
    %v2234 = vadd.f32 %v2232, %v2233
    %v2235 = vrot.slane %v2234, 2
    %v2236 = vadd.f32 %v2234, %v2235
    %v2237 = vrot.slane %v2236, 1
    %v2238 = vadd.f32 %v2236, %v2237
    %v2239 = vsel %vm353, %v1509, %v1590
    %v2240 = vsel %vm1289, %v2239, %v1671
    %v2241 = vsel %vm1291, %v2240, %v1752
    %v2242 = vsel %vm1293, %v2241, %v1833
    %v2243 = vsel %vm1295, %v2242, %v1914
    %v2244 = vsel %vm1297, %v2243, %v1995
    %v2245 = vsel %vm1299, %v2244, %v2076
    %v2246 = vsel %vm1301, %v2245, %v2157
    %v2247 = vsel %vm1303, %v2246, %v2238
    %v2249 = vlaneseq
    %v2250 = vshrl.u32 %v2249, 7
    %v2251 = vsub.s32 0, %v2250
    %v2252 = vrot.slane %v1427, %v2251
    %2253 = vrot.lane.b32.xlu0 %v2252, 127
    %v2254 = vpop.permute.xlu0 %2253
    %v2256 = vadd.f32 %v2247, %v2254
    %v2257 = vsub.f32 %v1428, %v1428
    %v2258 = vmul.f32 %v2257, 1.442695
    %v2259 = vpow.pop %v2258
    %v2260 = vadd.f32 %v2259, 0.0
    %v2261 = vlog2.pop %v2260
    %v2262 = vmul.f32 %v2261, 0.6931472
    %v2263 = vsub.f32 %v2257, %v2262
    %2264 = vst.msk [vmem:[%s12 + $0x1] sm:$0x1] %vm1321, %v2263
    %v2265 = vsel %vm1323, %v2256, -inf
    %2266 = vmax.xlane.f32.xlu0 %v2265
    %v2267 = vpop.xlane.xlu0 %2266
    %v2268 = vsub.f32 %v2256, %v2267
    %v2269 = vmul.f32 %v2268, 1.442695
    %v2270 = vpow.pop %v2269
    %v2271 = vsel %vm1323, %v2270, 0.0
    %2272 = vadd.xlane.f32.xlu0 %v2271
    %v2273 = vpop.xlane.xlu0 %2272
    %v2274 = vlog2.pop %v2273
    %v2275 = vmul.f32 %v2274, 0.6931472
    %v2276 = vsub.f32 %v2268, %v2275
    %2277 = vst.msk [vmem:[#allocation9 + $0x1] sm:$0x1] %vm1323, %v2276
    // Predicated region
    $region54: #{tpu_custom_call.1} parent=1 // pred_check
      _
    $region55: #{tpu_custom_call.1} parent=1 // pred_check_branch
      %2279 = sbr.rel (0) target = $region57
    $region56: #{tpu_custom_call.1} parent=1 // pred_region
      _
    $region57: #{tpu_custom_call.1} parent=1 // pred_fallthru
      _
    // Predicated region
    $region58: #{tpu_custom_call.1} parent=1 // pred_check
      _
    $region59: #{tpu_custom_call.1} parent=1 // pred_check_branch
      %2281 = sbr.rel (0) target = $region61
    $region60: #{tpu_custom_call.1} parent=1 // pred_region
      %s2283 = ssub.s32 32, 32
      %2284 = vsyncadd [#allocation8], %s2283
      %s2286 = sshll.u32 [#allocation9], 4
      %s2287 = int_to_ptr.vmem [resolvable:$true] %s2286
      %2289 = dma.vmem_to_hbm [thread:$0]  %s2287, 32, %s13, [#allocation8]
    $region61: #{tpu_custom_call.1} parent=1 // pred_fallthru
      _
    // Predicated region
    $region62: #{tpu_custom_call.1} parent=1 // pred_check
      _
    $region63: #{tpu_custom_call.1} parent=1 // pred_check_branch
      %2291 = sbr.rel (0) target = $region65
    $region64: #{tpu_custom_call.1} parent=1 // pred_region
      _
    $region65: #{tpu_custom_call.1} parent=1 // pred_fallthru
      _
    // Predicated region
    $region66: #{tpu_custom_call.1} parent=1 // pred_check
      _
    $region67: #{tpu_custom_call.1} parent=1 // pred_check_branch
      %2293 = sbr.rel (0) target = $region69
    $region68: #{tpu_custom_call.1} parent=1 // pred_region
      %2294 = dma.done [#allocation8], 32
    $region69: #{tpu_custom_call.1} parent=1 // pred_fallthru
      _
    %2295 = vsyncpa [#allocation7], 1
    %2296 = vsyncpa [#allocation8], 1

</llo_original>
